<compile_context>
chip_gen: v6e
topology: v6e:2x2x1
jax: 0.10.0
libtpu: 0.0.40
codegen_flags: <defaults>
</compile_context>

<pallas_src>
import functools

import jax
import jax.numpy as jnp
import numpy as np
from jax.experimental import pallas as pl
from jax.experimental.pallas import tpu as pltpu

F_PAD = 128  # lane-dense feature padding (all logical feature dims <= 128)

_W_KEYS = (
    "We_e", "We_r", "We_s", "We_g", "b_e",
    "Wn_a", "Wn_n", "Wn_g", "b_n",
    "Wg_e", "Wg_n", "Wg_g", "b_g",
    "Wd1_r", "Wd1_s", "Wd1_n", "Wd1_g", "b_d1",
    "Wd2", "b_d2",
)


def _round_up(x, m):
    return (x + m - 1) // m * m


# ----------------------------------------------------------------------------
# Fused Net2 forward kernel (single VMEM block, everything stays on-chip)
# ----------------------------------------------------------------------------
def _net2_kernel(node_ref, edge_ref, glob_ref,
                 recv_col_ref, send_col_ref, recv_row_ref, send_row_ref,
                 we_e_ref, we_r_ref, we_s_ref, we_g_ref, be_ref,
                 wn_a_ref, wn_n_ref, wn_g_ref, bn_ref,
                 wg_e_ref, wg_n_ref, wg_g_ref, bg_ref,
                 wd1_r_ref, wd1_s_ref, wd1_n_ref, wd1_g_ref, bd1_ref,
                 wd2_ref, bd2_ref,
                 node_out_ref, edge_out_ref, glob_out_ref,
                 *, n_nodes, n_edges):
    f32, bf16 = jnp.float32, jnp.bfloat16
    n_pad = node_ref.shape[0]
    e_pad = edge_ref.shape[0]

    node_f = node_ref[...]                       # (n_pad, F) f32, zero-padded
    edge_f = edge_ref[...]                       # (e_pad, F)
    glob_f = glob_ref[...]                       # (1, F)
    node_bf = node_f.astype(bf16)
    glob_bf = glob_f.astype(bf16)

    # --- one-hot gather / scatter matrices built in-register from indices ---
    # padded edges carry an out-of-range index => all-zero rows/cols.
    iota_en = jax.lax.broadcasted_iota(jnp.int32, (e_pad, n_pad), 1)
    gather_recv = (recv_col_ref[...] == iota_en).astype(f32)   # (e_pad, n_pad)
    gather_send = (send_col_ref[...] == iota_en).astype(f32)

    iota_ne = jax.lax.broadcasted_iota(jnp.int32, (n_pad, e_pad), 0)
    scat_recv = (iota_ne == recv_row_ref[...]).astype(f32)     # (n_pad, e_pad)
    scat_send = (iota_ne == send_row_ref[...]).astype(f32)
    cnt_recv = jnp.maximum(jnp.sum(scat_recv, axis=1, keepdims=True), 1.0)
    cnt_send = jnp.maximum(jnp.sum(scat_send, axis=1, keepdims=True), 1.0)

    # row-validity masks (kill bias/global leakage into padded rows)
    e_mask = (jax.lax.broadcasted_iota(jnp.int32, (e_pad, 1), 0) < n_edges).astype(f32)
    n_mask = (jax.lax.broadcasted_iota(jnp.int32, (n_pad, 1), 0) < n_nodes).astype(f32)

    def mm(a_bf16, w_ref):  # bf16 x bf16 -> f32 accumulation on the MXU
        return jnp.dot(a_bf16, w_ref[...], preferred_element_type=f32)

    # ---------------- gn1 : EdgeBlock ---------------------------------------
    recv_nodes = jnp.dot(gather_recv, node_f, preferred_element_type=f32)
    send_nodes = jnp.dot(gather_send, node_f, preferred_element_type=f32)
    edge_acc = (mm(edge_f.astype(bf16), we_e_ref)
                + mm(recv_nodes.astype(bf16), we_r_ref)
                + mm(send_nodes.astype(bf16), we_s_ref)
                + mm(glob_bf, we_g_ref)
                + be_ref[...])
    edge_h = jnp.maximum(edge_acc, 0.0) * e_mask               # (e_pad, F) f32

    # ---------------- gn1 : NodeBlock (scatter_add over receivers) ----------
    recv_agg = jnp.dot(scat_recv, edge_h, preferred_element_type=f32)  # (n_pad, F)
    node_acc = (mm(recv_agg.astype(bf16), wn_a_ref)
                + mm(node_bf, wn_n_ref)
                + mm(glob_bf, wn_g_ref)
                + bn_ref[...])
    node_h = jnp.maximum(node_acc, 0.0) * n_mask               # (n_pad, F) f32

    # ---------------- gn1 : GlobalBlock (means = column reductions) ---------
    edge_mean = jnp.sum(edge_h, axis=0, keepdims=True) * (1.0 / n_edges)
    node_mean = jnp.sum(node_h, axis=0, keepdims=True) * (1.0 / n_nodes)
    glob_acc = (mm(edge_mean.astype(bf16), wg_e_ref)
                + mm(node_mean.astype(bf16), wg_n_ref)
                + mm(glob_bf, wg_g_ref)
                + bg_ref[...])
    glob_h = jnp.maximum(glob_acc, 0.0)                        # (1, F) f32

    # ---------------- gn2 : node decoder NodeBlock ---------------------------
    recv_mean = recv_agg / cnt_recv                            # reuse recv_agg
    sent_agg = jnp.dot(scat_send, edge_h, preferred_element_type=f32)
    sent_mean = sent_agg / cnt_send
    dec_acc = (mm(recv_mean.astype(bf16), wd1_r_ref)
               + mm(sent_mean.astype(bf16), wd1_s_ref)
               + mm(node_h.astype(bf16), wd1_n_ref)
               + mm(glob_h.astype(bf16), wd1_g_ref)
               + bd1_ref[...])
    h = jnp.maximum(dec_acc, 0.0)
    node_out = mm(h.astype(bf16), wd2_ref) + bd2_ref[...]

    node_out_ref[...] = node_out
    edge_out_ref[...] = edge_h
    glob_out_ref[...] = glob_h


# ----------------------------------------------------------------------------
# Parameters: PyTorch nn.Linear-style init, then split + pad once for the TPU
# ----------------------------------------------------------------------------
def init_linear(key, in_dim, out_dim):
    k1, k2 = jax.random.split(key)
    bound = 1.0 / jnp.sqrt(jnp.float32(in_dim))
    w = jax.random.uniform(k1, (in_dim, out_dim), jnp.float32, -bound, bound)
    b = jax.random.uniform(k2, (out_dim,), jnp.float32, -bound, bound)
    return w, b


def init_net2_params(key, node_dim, edge_dim, out_dim,
                     edge_h=32, node_h=32, global_h=32):
    ks = jax.random.split(key, 5)
    p = {}
    p["W_e"], p["b_e"] = init_linear(ks[0], edge_dim + 2 * node_dim + global_h, edge_h)
    p["W_n"], p["b_n"] = init_linear(ks[1], node_dim + edge_h + global_h, node_h)
    p["W_g"], p["b_g"] = init_linear(ks[2], node_h + edge_h + global_h, global_h)
    p["W_d1"], p["b_d1"] = init_linear(ks[3], 2 * edge_h + node_h + global_h, node_h)
    p["W_d2"], p["b_d2"] = init_linear(ks[4], node_h, out_dim)
    return p


def _pad_w(w, dtype=jnp.bfloat16):
    k, n = w.shape
    assert k <= F_PAD and n <= F_PAD, (k, n)
    out = jnp.zeros((F_PAD, F_PAD), jnp.float32).at[:k, :n].set(w.astype(jnp.float32))
    return out.astype(dtype)


def _pad_b(b):
    (n,) = b.shape
    return jnp.zeros((1, F_PAD), jnp.float32).at[0, :n].set(b.astype(jnp.float32))


def pad_net2_params(p, node_dim, edge_dim, out_dim, edge_h, node_h, global_h):
    """Split concatenated Linear weights into partitioned (128,128) bf16 blocks
    (done once, outside the forward pass). Biases stay f32 (epilogue dtype)."""
    q = {}
    W = p["W_e"]; o = 0
    q["We_e"] = _pad_w(W[o:o + edge_dim]); o += edge_dim
    q["We_r"] = _pad_w(W[o:o + node_dim]); o += node_dim
    q["We_s"] = _pad_w(W[o:o + node_dim]); o += node_dim
    q["We_g"] = _pad_w(W[o:o + global_h])
    q["b_e"] = _pad_b(p["b_e"])

    W = p["W_n"]; o = 0
    q["Wn_a"] = _pad_w(W[o:o + edge_h]); o += edge_h
    q["Wn_n"] = _pad_w(W[o:o + node_dim]); o += node_dim
    q["Wn_g"] = _pad_w(W[o:o + global_h])
    q["b_n"] = _pad_b(p["b_n"])

    W = p["W_g"]; o = 0
    q["Wg_e"] = _pad_w(W[o:o + edge_h]); o += edge_h
    q["Wg_n"] = _pad_w(W[o:o + node_h]); o += node_h
    q["Wg_g"] = _pad_w(W[o:o + global_h])
    q["b_g"] = _pad_b(p["b_g"])

    W = p["W_d1"]; o = 0
    q["Wd1_r"] = _pad_w(W[o:o + edge_h]); o += edge_h
    q["Wd1_s"] = _pad_w(W[o:o + edge_h]); o += edge_h
    q["Wd1_n"] = _pad_w(W[o:o + node_h]); o += node_h
    q["Wd1_g"] = _pad_w(W[o:o + global_h])
    q["b_d1"] = _pad_b(p["b_d1"])

    q["Wd2"] = _pad_w(p["W_d2"])
    q["b_d2"] = _pad_b(p["b_d2"])
    return q


# ----------------------------------------------------------------------------
# Fused forward wrapper
# ----------------------------------------------------------------------------
@functools.partial(jax.jit, static_argnums=(0,))
def net2_forward(dims, wp, node_attr, edge_attr, senders, receivers, global_attr):
    node_dim, edge_dim, out_dim, edge_h, node_h, global_h = dims
    N = node_attr.shape[0]
    E = edge_attr.shape[0]
    n_pad = _round_up(max(N, 8), 8)
    e_pad = _round_up(max(E, 8), 8)

    # Lane-pad activations once (zero pad is exact for matmul+bias+relu,
    # padded rows are masked inside the kernel).
    node_p = jnp.zeros((n_pad, F_PAD), jnp.float32).at[:N, :node_dim].set(
        node_attr.astype(jnp.float32))
    edge_p = jnp.zeros((e_pad, F_PAD), jnp.float32).at[:E, :edge_dim].set(
        edge_attr.astype(jnp.float32))
    glob_p = jnp.zeros((1, F_PAD), jnp.float32).at[:, :global_attr.shape[-1]].set(
        global_attr.astype(jnp.float32))

    recv = receivers.astype(jnp.int32)
    send = senders.astype(jnp.int32)
    pad_idx = jnp.int32(n_pad)  # out-of-range => padded edges select nothing
    recv_col = jnp.full((e_pad, 1), pad_idx, jnp.int32).at[:E, 0].set(recv)
    send_col = jnp.full((e_pad, 1), pad_idx, jnp.int32).at[:E, 0].set(send)
    recv_row = jnp.full((1, e_pad), pad_idx, jnp.int32).at[0, :E].set(recv)
    send_row = jnp.full((1, e_pad), pad_idx, jnp.int32).at[0, :E].set(send)

    w_args = [wp[k] for k in _W_KEYS]
    vmem = pl.BlockSpec(memory_space=pltpu.MemorySpace.VMEM)

    node_out, edge_out, glob_out = pl.pallas_call(
        functools.partial(_net2_kernel, n_nodes=N, n_edges=E),
        out_shape=(
            jax.ShapeDtypeStruct((n_pad, F_PAD), jnp.float32),
            jax.ShapeDtypeStruct((e_pad, F_PAD), jnp.float32),
            jax.ShapeDtypeStruct((1, F_PAD), jnp.float32),
        ),
        in_specs=[vmem] * (7 + len(_W_KEYS)),
        out_specs=(vmem, vmem, vmem),
    )(node_p, edge_p, glob_p, recv_col, send_col, recv_row, send_row, *w_args)

    return {
        "node_attr": node_out[:N, :out_dim],
        "edge_attr": edge_out[:E, :edge_h],
        "global_attr": glob_out[:, :global_h],
    }


# ----------------------------------------------------------------------------
# Pure-JAX reference (same math, bf16-cast linears, exact f32 scatter)
# ----------------------------------------------------------------------------
def _ref_linear(x, w, b, relu):
    y = jnp.dot(x.astype(jnp.bfloat16), w.astype(jnp.bfloat16),
                preferred_element_type=jnp.float32) + b
    return jnp.maximum(y, 0.0) if relu else y


def net2_reference(params, node_attr, edge_attr, senders, receivers, global_attr):
    N, E = node_attr.shape[0], edge_attr.shape[0]
    g = global_attr
    edge_in = jnp.concatenate(
        [edge_attr, node_attr[receivers], node_attr[senders],
         jnp.broadcast_to(g, (E, g.shape[-1]))], axis=-1)
    edge_h = _ref_linear(edge_in, params["W_e"], params["b_e"], True)

    F = edge_h.shape[-1]
    recv_agg = jnp.zeros((N, F), jnp.float32).at[receivers].add(edge_h)
    node_in = jnp.concatenate(
        [recv_agg, node_attr, jnp.broadcast_to(g, (N, g.shape[-1]))], axis=-1)
    node_h = _ref_linear(node_in, params["W_n"], params["b_n"], True)

    edge_mean = jnp.mean(edge_h, axis=0, keepdims=True)
    node_mean = jnp.mean(node_h, axis=0, keepdims=True)
    glob_in = jnp.concatenate([edge_mean, node_mean, g], axis=-1)
    glob_h = _ref_linear(glob_in, params["W_g"], params["b_g"], True)

    cnt_r = jnp.maximum(jnp.zeros((N, 1), jnp.float32).at[receivers].add(1.0), 1.0)
    cnt_s = jnp.maximum(jnp.zeros((N, 1), jnp.float32).at[senders].add(1.0), 1.0)
    recv_mean = recv_agg / cnt_r
    sent_mean = jnp.zeros((N, F), jnp.float32).at[senders].add(edge_h) / cnt_s
    dec_in = jnp.concatenate(
        [recv_mean, sent_mean, node_h,
         jnp.broadcast_to(glob_h, (N, glob_h.shape[-1]))], axis=-1)
    h = _ref_linear(dec_in, params["W_d1"], params["b_d1"], True)
    node_out = _ref_linear(h, params["W_d2"], params["b_d2"], False)
    return {"node_attr": node_out, "edge_attr": edge_h, "global_attr": glob_h}


# ----------------------------------------------------------------------------
if __name__ == "__main__":
    NODE_DIM, EDGE_DIM, OUT_DIM = 4, 6, 3
    EDGE_H = NODE_H = GLOBAL_H = 32
    N_NODES, N_EDGES = 8, 16

    root = jax.random.PRNGKey(0)
    k_param, k_node, k_edge, k_glob, k_s, k_r = jax.random.split(root, 6)

    params = init_net2_params(k_param, NODE_DIM, EDGE_DIM, OUT_DIM,
                              edge_h=EDGE_H, node_h=NODE_H, global_h=GLOBAL_H)
    padded_params = pad_net2_params(params, NODE_DIM, EDGE_DIM, OUT_DIM,
                                    EDGE_H, NODE_H, GLOBAL_H)

    node_attr = jax.random.normal(k_node, (N_NODES, NODE_DIM), jnp.float32)
    edge_attr = jax.random.normal(k_edge, (N_EDGES, EDGE_DIM), jnp.float32)
    global_attr = jax.random.normal(k_glob, (1, GLOBAL_H), jnp.float32)
    senders = jax.random.randint(k_s, (N_EDGES,), 0, N_NODES)
    receivers = jax.random.randint(k_r, (N_EDGES,), 0, N_NODES)

    dims = (NODE_DIM, EDGE_DIM, OUT_DIM, EDGE_H, NODE_H, GLOBAL_H)
    out_graph = net2_forward(dims, padded_params, node_attr, edge_attr,
                             senders, receivers, global_attr)
    jax.block_until_ready(out_graph)

    assert out_graph["node_attr"].shape == (N_NODES, OUT_DIM)
    assert out_graph["edge_attr"].shape == (N_EDGES, EDGE_H)
    assert out_graph["global_attr"].shape == (1, GLOBAL_H)

    ref = net2_reference(params, node_attr, edge_attr, senders, receivers, global_attr)
    for k in ("node_attr", "edge_attr", "global_attr"):
        np.testing.assert_allclose(np.asarray(out_graph[k]), np.asarray(ref[k]),
                                   rtol=5e-2, atol=5e-2)

    print("KERNEL_OK")
</pallas_src>

<mosaic_0001>
module attributes {stable_mosaic.version = 11 : i64} {
  func.func @_net2_kernel(%arg0: memref<8x128xf32, #tpu.memory_space<vmem>>, %arg1: memref<16x128xf32, #tpu.memory_space<vmem>>, %arg2: memref<1x128xf32, #tpu.memory_space<vmem>>, %arg3: memref<16x1xi32, #tpu.memory_space<vmem>>, %arg4: memref<16x1xi32, #tpu.memory_space<vmem>>, %arg5: memref<1x16xi32, #tpu.memory_space<vmem>>, %arg6: memref<1x16xi32, #tpu.memory_space<vmem>>, %arg7: memref<128x128xbf16, #tpu.memory_space<vmem>>, %arg8: memref<128x128xbf16, #tpu.memory_space<vmem>>, %arg9: memref<128x128xbf16, #tpu.memory_space<vmem>>, %arg10: memref<128x128xbf16, #tpu.memory_space<vmem>>, %arg11: memref<1x128xf32, #tpu.memory_space<vmem>>, %arg12: memref<128x128xbf16, #tpu.memory_space<vmem>>, %arg13: memref<128x128xbf16, #tpu.memory_space<vmem>>, %arg14: memref<128x128xbf16, #tpu.memory_space<vmem>>, %arg15: memref<1x128xf32, #tpu.memory_space<vmem>>, %arg16: memref<128x128xbf16, #tpu.memory_space<vmem>>, %arg17: memref<128x128xbf16, #tpu.memory_space<vmem>>, %arg18: memref<128x128xbf16, #tpu.memory_space<vmem>>, %arg19: memref<1x128xf32, #tpu.memory_space<vmem>>, %arg20: memref<128x128xbf16, #tpu.memory_space<vmem>>, %arg21: memref<128x128xbf16, #tpu.memory_space<vmem>>, %arg22: memref<128x128xbf16, #tpu.memory_space<vmem>>, %arg23: memref<128x128xbf16, #tpu.memory_space<vmem>>, %arg24: memref<1x128xf32, #tpu.memory_space<vmem>>, %arg25: memref<128x128xbf16, #tpu.memory_space<vmem>>, %arg26: memref<1x128xf32, #tpu.memory_space<vmem>>, %arg27: memref<8x128xf32, #tpu.memory_space<vmem>>, %arg28: memref<16x128xf32, #tpu.memory_space<vmem>>, %arg29: memref<1x128xf32, #tpu.memory_space<vmem>>) attributes {dimension_semantics = [], scalar_prefetch = 0 : i64, scratch_operands = 0 : i64, tpu.core_type = #tpu.core_type<tc>} {
    %c0 = arith.constant 0 : index
    %c0_0 = arith.constant 0 : index
    %0 = vector.load %arg0[%c0, %c0_0] : memref<8x128xf32, #tpu.memory_space<vmem>>, vector<8x128xf32>
    %c0_1 = arith.constant 0 : index
    %c0_2 = arith.constant 0 : index
    %1 = vector.load %arg1[%c0_1, %c0_2] : memref<16x128xf32, #tpu.memory_space<vmem>>, vector<16x128xf32>
    %c0_3 = arith.constant 0 : index
    %c0_4 = arith.constant 0 : index
    %2 = vector.load %arg2[%c0_3, %c0_4] : memref<1x128xf32, #tpu.memory_space<vmem>>, vector<1x128xf32>
    %3 = arith.truncf %0 : vector<8x128xf32> to vector<8x128xbf16>
    %4 = arith.truncf %2 : vector<1x128xf32> to vector<1x128xbf16>
    %5 = tpu.iota {dimensions = array<i32: 1>} : vector<16x8xi32>
    %c0_5 = arith.constant 0 : index
    %c0_6 = arith.constant 0 : index
    %6 = vector.load %arg3[%c0_5, %c0_6] : memref<16x1xi32, #tpu.memory_space<vmem>>, vector<16x1xi32>
    %7 = vector.broadcast %6 : vector<16x1xi32> to vector<16x8xi32>
    %8 = arith.cmpi eq, %7, %5 : vector<16x8xi32>
    %9 = arith.extui %8 : vector<16x8xi1> to vector<16x8xi32>
    %10 = arith.sitofp %9 : vector<16x8xi32> to vector<16x8xf32>
    %c0_7 = arith.constant 0 : index
    %c0_8 = arith.constant 0 : index
    %11 = vector.load %arg4[%c0_7, %c0_8] : memref<16x1xi32, #tpu.memory_space<vmem>>, vector<16x1xi32>
    %12 = vector.broadcast %11 : vector<16x1xi32> to vector<16x8xi32>
    %13 = arith.cmpi eq, %12, %5 : vector<16x8xi32>
    %14 = arith.extui %13 : vector<16x8xi1> to vector<16x8xi32>
    %15 = arith.sitofp %14 : vector<16x8xi32> to vector<16x8xf32>
    %16 = tpu.iota {dimensions = array<i32: 0>} : vector<8x16xi32>
    %c0_9 = arith.constant 0 : index
    %c0_10 = arith.constant 0 : index
    %17 = vector.load %arg5[%c0_9, %c0_10] : memref<1x16xi32, #tpu.memory_space<vmem>>, vector<1x16xi32>
    %18 = vector.broadcast %17 : vector<1x16xi32> to vector<8x16xi32>
    %19 = arith.cmpi eq, %16, %18 : vector<8x16xi32>
    %20 = arith.extui %19 : vector<8x16xi1> to vector<8x16xi32>
    %21 = arith.sitofp %20 : vector<8x16xi32> to vector<8x16xf32>
    %c0_11 = arith.constant 0 : index
    %c0_12 = arith.constant 0 : index
    %22 = vector.load %arg6[%c0_11, %c0_12] : memref<1x16xi32, #tpu.memory_space<vmem>>, vector<1x16xi32>
    %23 = vector.broadcast %22 : vector<1x16xi32> to vector<8x16xi32>
    %24 = arith.cmpi eq, %16, %23 : vector<8x16xi32>
    %25 = arith.extui %24 : vector<8x16xi1> to vector<8x16xi32>
    %26 = arith.sitofp %25 : vector<8x16xi32> to vector<8x16xf32>
    %cst = arith.constant dense<0.000000e+00> : vector<8xf32>
    %27 = vector.multi_reduction <add>, %21, %cst [1] : vector<8x16xf32> to vector<8xf32>
    %28 = vector.shape_cast %27 : vector<8xf32> to vector<8x1xf32>
    %cst_13 = arith.constant 1.000000e+00 : f32
    %29 = vector.broadcast %cst_13 : f32 to vector<8x1xf32>
    %30 = arith.maximumf %28, %29 : vector<8x1xf32>
    %cst_14 = arith.constant dense<0.000000e+00> : vector<8xf32>
    %31 = vector.multi_reduction <add>, %26, %cst_14 [1] : vector<8x16xf32> to vector<8xf32>
    %32 = vector.shape_cast %31 : vector<8xf32> to vector<8x1xf32>
    %cst_15 = arith.constant 1.000000e+00 : f32
    %33 = vector.broadcast %cst_15 : f32 to vector<8x1xf32>
    %34 = arith.maximumf %32, %33 : vector<8x1xf32>
    %35 = tpu.iota {dimensions = array<i32: 0>} : vector<16x1xi32>
    %c16_i32 = arith.constant 16 : i32
    %36 = vector.broadcast %c16_i32 : i32 to vector<16x1xi32>
    %37 = arith.cmpi slt, %35, %36 : vector<16x1xi32>
    %38 = arith.extui %37 : vector<16x1xi1> to vector<16x1xi32>
    %39 = arith.sitofp %38 : vector<16x1xi32> to vector<16x1xf32>
    %40 = tpu.iota {dimensions = array<i32: 0>} : vector<8x1xi32>
    %c8_i32 = arith.constant 8 : i32
    %41 = vector.broadcast %c8_i32 : i32 to vector<8x1xi32>
    %42 = arith.cmpi slt, %40, %41 : vector<8x1xi32>
    %43 = arith.extui %42 : vector<8x1xi1> to vector<8x1xi32>
    %44 = arith.sitofp %43 : vector<8x1xi32> to vector<8x1xf32>
    %cst_16 = arith.constant dense<0.000000e+00> : vector<16x128xf32>
    %45 = tpu.matmul %10, %0, %cst_16 {dimension_numbers = #tpu.dot_dimension_numbers<[1], [0], [0], [1], [0, 0, 1, 1], [], []>} : vector<16x8xf32>, vector<8x128xf32>, vector<16x128xf32> -> vector<16x128xf32>
    %cst_17 = arith.constant dense<0.000000e+00> : vector<16x128xf32>
    %46 = tpu.matmul %15, %0, %cst_17 {dimension_numbers = #tpu.dot_dimension_numbers<[1], [0], [0], [1], [0, 0, 1, 1], [], []>} : vector<16x8xf32>, vector<8x128xf32>, vector<16x128xf32> -> vector<16x128xf32>
    %47 = arith.truncf %1 : vector<16x128xf32> to vector<16x128xbf16>
    %c0_18 = arith.constant 0 : index
    %c0_19 = arith.constant 0 : index
    %48 = vector.load %arg7[%c0_18, %c0_19] : memref<128x128xbf16, #tpu.memory_space<vmem>>, vector<128x128xbf16>
    %cst_20 = arith.constant dense<0.000000e+00> : vector<16x128xf32>
    %49 = tpu.matmul %47, %48, %cst_20 {dimension_numbers = #tpu.dot_dimension_numbers<[1], [0], [0], [1], [0, 0, 1, 1], [], []>} : vector<16x128xbf16>, vector<128x128xbf16>, vector<16x128xf32> -> vector<16x128xf32>
    %50 = arith.truncf %45 : vector<16x128xf32> to vector<16x128xbf16>
    %c0_21 = arith.constant 0 : index
    %c0_22 = arith.constant 0 : index
    %51 = vector.load %arg8[%c0_21, %c0_22] : memref<128x128xbf16, #tpu.memory_space<vmem>>, vector<128x128xbf16>
    %cst_23 = arith.constant dense<0.000000e+00> : vector<16x128xf32>
    %52 = tpu.matmul %50, %51, %cst_23 {dimension_numbers = #tpu.dot_dimension_numbers<[1], [0], [0], [1], [0, 0, 1, 1], [], []>} : vector<16x128xbf16>, vector<128x128xbf16>, vector<16x128xf32> -> vector<16x128xf32>
    %53 = arith.addf %49, %52 : vector<16x128xf32>
    %54 = arith.truncf %46 : vector<16x128xf32> to vector<16x128xbf16>
    %c0_24 = arith.constant 0 : index
    %c0_25 = arith.constant 0 : index
    %55 = vector.load %arg9[%c0_24, %c0_25] : memref<128x128xbf16, #tpu.memory_space<vmem>>, vector<128x128xbf16>
    %cst_26 = arith.constant dense<0.000000e+00> : vector<16x128xf32>
    %56 = tpu.matmul %54, %55, %cst_26 {dimension_numbers = #tpu.dot_dimension_numbers<[1], [0], [0], [1], [0, 0, 1, 1], [], []>} : vector<16x128xbf16>, vector<128x128xbf16>, vector<16x128xf32> -> vector<16x128xf32>
    %57 = arith.addf %53, %56 : vector<16x128xf32>
    %c0_27 = arith.constant 0 : index
    %c0_28 = arith.constant 0 : index
    %58 = vector.load %arg10[%c0_27, %c0_28] : memref<128x128xbf16, #tpu.memory_space<vmem>>, vector<128x128xbf16>
    %cst_29 = arith.constant dense<0.000000e+00> : vector<1x128xf32>
    %59 = tpu.matmul %4, %58, %cst_29 {dimension_numbers = #tpu.dot_dimension_numbers<[1], [0], [0], [1], [0, 0, 1, 1], [], []>} : vector<1x128xbf16>, vector<128x128xbf16>, vector<1x128xf32> -> vector<1x128xf32>
    %60 = vector.broadcast %59 : vector<1x128xf32> to vector<16x128xf32>
    %61 = arith.addf %57, %60 : vector<16x128xf32>
    %c0_30 = arith.constant 0 : index
    %c0_31 = arith.constant 0 : index
    %62 = vector.load %arg11[%c0_30, %c0_31] : memref<1x128xf32, #tpu.memory_space<vmem>>, vector<1x128xf32>
    %63 = vector.broadcast %62 : vector<1x128xf32> to vector<16x128xf32>
    %64 = arith.addf %61, %63 : vector<16x128xf32>
    %cst_32 = arith.constant 0.000000e+00 : f32
    %65 = vector.broadcast %cst_32 : f32 to vector<16x128xf32>
    %66 = arith.maximumf %64, %65 : vector<16x128xf32>
    %67 = vector.broadcast %39 : vector<16x1xf32> to vector<16x128xf32>
    %68 = arith.mulf %66, %67 : vector<16x128xf32>
    %cst_33 = arith.constant dense<0.000000e+00> : vector<8x128xf32>
    %69 = tpu.matmul %21, %68, %cst_33 {dimension_numbers = #tpu.dot_dimension_numbers<[1], [0], [0], [1], [0, 0, 1, 1], [], []>} : vector<8x16xf32>, vector<16x128xf32>, vector<8x128xf32> -> vector<8x128xf32>
    %70 = arith.truncf %69 : vector<8x128xf32> to vector<8x128xbf16>
    %c0_34 = arith.constant 0 : index
    %c0_35 = arith.constant 0 : index
    %71 = vector.load %arg12[%c0_34, %c0_35] : memref<128x128xbf16, #tpu.memory_space<vmem>>, vector<128x128xbf16>
    %cst_36 = arith.constant dense<0.000000e+00> : vector<8x128xf32>
    %72 = tpu.matmul %70, %71, %cst_36 {dimension_numbers = #tpu.dot_dimension_numbers<[1], [0], [0], [1], [0, 0, 1, 1], [], []>} : vector<8x128xbf16>, vector<128x128xbf16>, vector<8x128xf32> -> vector<8x128xf32>
    %c0_37 = arith.constant 0 : index
    %c0_38 = arith.constant 0 : index
    %73 = vector.load %arg13[%c0_37, %c0_38] : memref<128x128xbf16, #tpu.memory_space<vmem>>, vector<128x128xbf16>
    %cst_39 = arith.constant dense<0.000000e+00> : vector<8x128xf32>
    %74 = tpu.matmul %3, %73, %cst_39 {dimension_numbers = #tpu.dot_dimension_numbers<[1], [0], [0], [1], [0, 0, 1, 1], [], []>} : vector<8x128xbf16>, vector<128x128xbf16>, vector<8x128xf32> -> vector<8x128xf32>
    %75 = arith.addf %72, %74 : vector<8x128xf32>
    %c0_40 = arith.constant 0 : index
    %c0_41 = arith.constant 0 : index
    %76 = vector.load %arg14[%c0_40, %c0_41] : memref<128x128xbf16, #tpu.memory_space<vmem>>, vector<128x128xbf16>
    %cst_42 = arith.constant dense<0.000000e+00> : vector<1x128xf32>
    %77 = tpu.matmul %4, %76, %cst_42 {dimension_numbers = #tpu.dot_dimension_numbers<[1], [0], [0], [1], [0, 0, 1, 1], [], []>} : vector<1x128xbf16>, vector<128x128xbf16>, vector<1x128xf32> -> vector<1x128xf32>
    %78 = vector.broadcast %77 : vector<1x128xf32> to vector<8x128xf32>
    %79 = arith.addf %75, %78 : vector<8x128xf32>
    %c0_43 = arith.constant 0 : index
    %c0_44 = arith.constant 0 : index
    %80 = vector.load %arg15[%c0_43, %c0_44] : memref<1x128xf32, #tpu.memory_space<vmem>>, vector<1x128xf32>
    %81 = vector.broadcast %80 : vector<1x128xf32> to vector<8x128xf32>
    %82 = arith.addf %79, %81 : vector<8x128xf32>
    %cst_45 = arith.constant 0.000000e+00 : f32
    %83 = vector.broadcast %cst_45 : f32 to vector<8x128xf32>
    %84 = arith.maximumf %82, %83 : vector<8x128xf32>
    %85 = vector.broadcast %44 : vector<8x1xf32> to vector<8x128xf32>
    %86 = arith.mulf %84, %85 : vector<8x128xf32>
    %cst_46 = arith.constant dense<0.000000e+00> : vector<128xf32>
    %87 = vector.multi_reduction <add>, %68, %cst_46 [0] : vector<16x128xf32> to vector<128xf32>
    %88 = vector.shape_cast %87 : vector<128xf32> to vector<1x128xf32>
    %cst_47 = arith.constant 6.250000e-02 : f32
    %89 = vector.broadcast %cst_47 : f32 to vector<1x128xf32>
    %90 = arith.mulf %88, %89 : vector<1x128xf32>
    %cst_48 = arith.constant dense<0.000000e+00> : vector<128xf32>
    %91 = vector.multi_reduction <add>, %86, %cst_48 [0] : vector<8x128xf32> to vector<128xf32>
    %92 = vector.shape_cast %91 : vector<128xf32> to vector<1x128xf32>
    %cst_49 = arith.constant 1.250000e-01 : f32
    %93 = vector.broadcast %cst_49 : f32 to vector<1x128xf32>
    %94 = arith.mulf %92, %93 : vector<1x128xf32>
    %95 = arith.truncf %90 : vector<1x128xf32> to vector<1x128xbf16>
    %c0_50 = arith.constant 0 : index
    %c0_51 = arith.constant 0 : index
    %96 = vector.load %arg16[%c0_50, %c0_51] : memref<128x128xbf16, #tpu.memory_space<vmem>>, vector<128x128xbf16>
    %cst_52 = arith.constant dense<0.000000e+00> : vector<1x128xf32>
    %97 = tpu.matmul %95, %96, %cst_52 {dimension_numbers = #tpu.dot_dimension_numbers<[1], [0], [0], [1], [0, 0, 1, 1], [], []>} : vector<1x128xbf16>, vector<128x128xbf16>, vector<1x128xf32> -> vector<1x128xf32>
    %98 = arith.truncf %94 : vector<1x128xf32> to vector<1x128xbf16>
    %c0_53 = arith.constant 0 : index
    %c0_54 = arith.constant 0 : index
    %99 = vector.load %arg17[%c0_53, %c0_54] : memref<128x128xbf16, #tpu.memory_space<vmem>>, vector<128x128xbf16>
    %cst_55 = arith.constant dense<0.000000e+00> : vector<1x128xf32>
    %100 = tpu.matmul %98, %99, %cst_55 {dimension_numbers = #tpu.dot_dimension_numbers<[1], [0], [0], [1], [0, 0, 1, 1], [], []>} : vector<1x128xbf16>, vector<128x128xbf16>, vector<1x128xf32> -> vector<1x128xf32>
    %101 = arith.addf %97, %100 : vector<1x128xf32>
    %c0_56 = arith.constant 0 : index
    %c0_57 = arith.constant 0 : index
    %102 = vector.load %arg18[%c0_56, %c0_57] : memref<128x128xbf16, #tpu.memory_space<vmem>>, vector<128x128xbf16>
    %cst_58 = arith.constant dense<0.000000e+00> : vector<1x128xf32>
    %103 = tpu.matmul %4, %102, %cst_58 {dimension_numbers = #tpu.dot_dimension_numbers<[1], [0], [0], [1], [0, 0, 1, 1], [], []>} : vector<1x128xbf16>, vector<128x128xbf16>, vector<1x128xf32> -> vector<1x128xf32>
    %104 = arith.addf %101, %103 : vector<1x128xf32>
    %c0_59 = arith.constant 0 : index
    %c0_60 = arith.constant 0 : index
    %105 = vector.load %arg19[%c0_59, %c0_60] : memref<1x128xf32, #tpu.memory_space<vmem>>, vector<1x128xf32>
    %106 = arith.addf %104, %105 : vector<1x128xf32>
    %cst_61 = arith.constant 0.000000e+00 : f32
    %107 = vector.broadcast %cst_61 : f32 to vector<1x128xf32>
    %108 = arith.maximumf %106, %107 : vector<1x128xf32>
    %109 = vector.broadcast %30 : vector<8x1xf32> to vector<8x128xf32>
    %110 = arith.divf %69, %109 : vector<8x128xf32>
    %cst_62 = arith.constant dense<0.000000e+00> : vector<8x128xf32>
    %111 = tpu.matmul %26, %68, %cst_62 {dimension_numbers = #tpu.dot_dimension_numbers<[1], [0], [0], [1], [0, 0, 1, 1], [], []>} : vector<8x16xf32>, vector<16x128xf32>, vector<8x128xf32> -> vector<8x128xf32>
    %112 = vector.broadcast %34 : vector<8x1xf32> to vector<8x128xf32>
    %113 = arith.divf %111, %112 : vector<8x128xf32>
    %114 = arith.truncf %110 : vector<8x128xf32> to vector<8x128xbf16>
    %c0_63 = arith.constant 0 : index
    %c0_64 = arith.constant 0 : index
    %115 = vector.load %arg20[%c0_63, %c0_64] : memref<128x128xbf16, #tpu.memory_space<vmem>>, vector<128x128xbf16>
    %cst_65 = arith.constant dense<0.000000e+00> : vector<8x128xf32>
    %116 = tpu.matmul %114, %115, %cst_65 {dimension_numbers = #tpu.dot_dimension_numbers<[1], [0], [0], [1], [0, 0, 1, 1], [], []>} : vector<8x128xbf16>, vector<128x128xbf16>, vector<8x128xf32> -> vector<8x128xf32>
    %117 = arith.truncf %113 : vector<8x128xf32> to vector<8x128xbf16>
    %c0_66 = arith.constant 0 : index
    %c0_67 = arith.constant 0 : index
    %118 = vector.load %arg21[%c0_66, %c0_67] : memref<128x128xbf16, #tpu.memory_space<vmem>>, vector<128x128xbf16>
    %cst_68 = arith.constant dense<0.000000e+00> : vector<8x128xf32>
    %119 = tpu.matmul %117, %118, %cst_68 {dimension_numbers = #tpu.dot_dimension_numbers<[1], [0], [0], [1], [0, 0, 1, 1], [], []>} : vector<8x128xbf16>, vector<128x128xbf16>, vector<8x128xf32> -> vector<8x128xf32>
    %120 = arith.addf %116, %119 : vector<8x128xf32>
    %121 = arith.truncf %86 : vector<8x128xf32> to vector<8x128xbf16>
    %c0_69 = arith.constant 0 : index
    %c0_70 = arith.constant 0 : index
    %122 = vector.load %arg22[%c0_69, %c0_70] : memref<128x128xbf16, #tpu.memory_space<vmem>>, vector<128x128xbf16>
    %cst_71 = arith.constant dense<0.000000e+00> : vector<8x128xf32>
    %123 = tpu.matmul %121, %122, %cst_71 {dimension_numbers = #tpu.dot_dimension_numbers<[1], [0], [0], [1], [0, 0, 1, 1], [], []>} : vector<8x128xbf16>, vector<128x128xbf16>, vector<8x128xf32> -> vector<8x128xf32>
    %124 = arith.addf %120, %123 : vector<8x128xf32>
    %125 = arith.truncf %108 : vector<1x128xf32> to vector<1x128xbf16>
    %c0_72 = arith.constant 0 : index
    %c0_73 = arith.constant 0 : index
    %126 = vector.load %arg23[%c0_72, %c0_73] : memref<128x128xbf16, #tpu.memory_space<vmem>>, vector<128x128xbf16>
    %cst_74 = arith.constant dense<0.000000e+00> : vector<1x128xf32>
    %127 = tpu.matmul %125, %126, %cst_74 {dimension_numbers = #tpu.dot_dimension_numbers<[1], [0], [0], [1], [0, 0, 1, 1], [], []>} : vector<1x128xbf16>, vector<128x128xbf16>, vector<1x128xf32> -> vector<1x128xf32>
    %128 = vector.broadcast %127 : vector<1x128xf32> to vector<8x128xf32>
    %129 = arith.addf %124, %128 : vector<8x128xf32>
    %c0_75 = arith.constant 0 : index
    %c0_76 = arith.constant 0 : index
    %130 = vector.load %arg24[%c0_75, %c0_76] : memref<1x128xf32, #tpu.memory_space<vmem>>, vector<1x128xf32>
    %131 = vector.broadcast %130 : vector<1x128xf32> to vector<8x128xf32>
    %132 = arith.addf %129, %131 : vector<8x128xf32>
    %cst_77 = arith.constant 0.000000e+00 : f32
    %133 = vector.broadcast %cst_77 : f32 to vector<8x128xf32>
    %134 = arith.maximumf %132, %133 : vector<8x128xf32>
    %135 = arith.truncf %134 : vector<8x128xf32> to vector<8x128xbf16>
    %c0_78 = arith.constant 0 : index
    %c0_79 = arith.constant 0 : index
    %136 = vector.load %arg25[%c0_78, %c0_79] : memref<128x128xbf16, #tpu.memory_space<vmem>>, vector<128x128xbf16>
    %cst_80 = arith.constant dense<0.000000e+00> : vector<8x128xf32>
    %137 = tpu.matmul %135, %136, %cst_80 {dimension_numbers = #tpu.dot_dimension_numbers<[1], [0], [0], [1], [0, 0, 1, 1], [], []>} : vector<8x128xbf16>, vector<128x128xbf16>, vector<8x128xf32> -> vector<8x128xf32>
    %c0_81 = arith.constant 0 : index
    %c0_82 = arith.constant 0 : index
    %138 = vector.load %arg26[%c0_81, %c0_82] : memref<1x128xf32, #tpu.memory_space<vmem>>, vector<1x128xf32>
    %139 = vector.broadcast %138 : vector<1x128xf32> to vector<8x128xf32>
    %140 = arith.addf %137, %139 : vector<8x128xf32>
    %c0_83 = arith.constant 0 : index
    %c0_84 = arith.constant 0 : index
    %141 = vector.load %arg27[%c0_83, %c0_84] : memref<8x128xf32, #tpu.memory_space<vmem>>, vector<8x128xf32>
    tpu.vector_store %arg27[%c0_83, %c0_84], %140 {strides = array<i32>} : memref<8x128xf32, #tpu.memory_space<vmem>>, vector<8x128xf32>,
    %c0_85 = arith.constant 0 : index
    %c0_86 = arith.constant 0 : index
    %142 = vector.load %arg28[%c0_85, %c0_86] : memref<16x128xf32, #tpu.memory_space<vmem>>, vector<16x128xf32>
    tpu.vector_store %arg28[%c0_85, %c0_86], %68 {strides = array<i32>} : memref<16x128xf32, #tpu.memory_space<vmem>>, vector<16x128xf32>,
    %c0_87 = arith.constant 0 : index
    %c0_88 = arith.constant 0 : index
    %143 = vector.load %arg29[%c0_87, %c0_88] : memref<1x128xf32, #tpu.memory_space<vmem>>, vector<1x128xf32>
    tpu.vector_store %arg29[%c0_87, %c0_88], %108 {strides = array<i32>} : memref<1x128xf32, #tpu.memory_space<vmem>>, vector<1x128xf32>,
    return
  }
}

</mosaic_0001>

<llo_original>
// kernel: net2_forward.1
$region0: #{net2_forward.1}
  #allocation0 [shape = 'u32[]', space=smem, size = 0x4, offset = 0x4, fixed_abs, tag = 'smem constant byte address 0x4 - core index']
  #allocation1 [shape = 'u32[144,128]{1,0:T(1,128)}', space=vmem, size = 0x12000, scoped, tag = 'internal scratch']
  %s0 = inlined_call_operand.smem [shape: u32[30], index: -1, kind: input, shape index: {}]
  %s1 = sld [smem:[%s0]]
  %s2 = scalar_lea.smem %s0, 1
  %s3 = sld [smem:[%s2]]
  %s4 = scalar_lea.smem %s0, 2
  %s5 = sld [smem:[%s4]]
  %s6 = scalar_lea.smem %s0, 3
  %s7 = sld [smem:[%s6]]
  %s8 = scalar_lea.smem %s0, 4
  %s9 = sld [smem:[%s8]]
  %s10 = scalar_lea.smem %s0, 5
  %s11 = sld [smem:[%s10]]
  %s12 = scalar_lea.smem %s0, 6
  %s13 = sld [smem:[%s12]]
  %s14 = scalar_lea.smem %s0, 7
  %s15 = sld [smem:[%s14]]
  %s16 = scalar_lea.smem %s0, 8
  %s17 = sld [smem:[%s16]]
  %s18 = scalar_lea.smem %s0, 9
  %s19 = sld [smem:[%s18]]
  %s20 = scalar_lea.smem %s0, 10
  %s21 = sld [smem:[%s20]]
  %s22 = scalar_lea.smem %s0, 11
  %s23 = sld [smem:[%s22]]
  %s24 = scalar_lea.smem %s0, 12
  %s25 = sld [smem:[%s24]]
  %s26 = scalar_lea.smem %s0, 13
  %s27 = sld [smem:[%s26]]
  %s28 = scalar_lea.smem %s0, 14
  %s29 = sld [smem:[%s28]]
  %s30 = scalar_lea.smem %s0, 15
  %s31 = sld [smem:[%s30]]
  %s32 = scalar_lea.smem %s0, 16
  %s33 = sld [smem:[%s32]]
  %s34 = scalar_lea.smem %s0, 17
  %s35 = sld [smem:[%s34]]
  %s36 = scalar_lea.smem %s0, 18
  %s37 = sld [smem:[%s36]]
  %s38 = scalar_lea.smem %s0, 19
  %s39 = sld [smem:[%s38]]
  %s40 = scalar_lea.smem %s0, 20
  %s41 = sld [smem:[%s40]]
  %s42 = scalar_lea.smem %s0, 21
  %s43 = sld [smem:[%s42]]
  %s44 = scalar_lea.smem %s0, 22
  %s45 = sld [smem:[%s44]]
  %s46 = scalar_lea.smem %s0, 23
  %s47 = sld [smem:[%s46]]
  %s48 = scalar_lea.smem %s0, 24
  %s49 = sld [smem:[%s48]]
  %s50 = scalar_lea.smem %s0, 25
  %s51 = sld [smem:[%s50]]
  %s52 = scalar_lea.smem %s0, 26
  %s53 = sld [smem:[%s52]]
  %s54 = scalar_lea.smem %s0, 27
  %s55 = sld [smem:[%s54]]
  %s56 = scalar_lea.smem %s0, 28
  %s57 = sld [smem:[%s56]]
  %s58 = scalar_lea.smem %s0, 29
  %s59 = sld [smem:[%s58]]
  %60 = xla_tuple %s55, %s57, %s59
  %s61 = sld [smem:[#allocation0]]
  $region182: #{net2_forward.1} parent=0
    _
  %s63 = ssub.s32 1, %s61
  %s64 = scalar_select 0, %s63, %s61
  $region1: #{net2_forward.1} parent=0
    #allocation2 [shape = 'u8[32768]{0}', space=vmem, size = 0x8000, scoped, tag = 'input window, operand 10, single buffered']
    #allocation3 [shape = 's32[1]{0}', space=sflag, size = 0x4, scoped, tag = 'scoped memory for net2_forward.1']
    #allocation4 [shape = 's32[1]{0}', space=sflag, size = 0x4, scoped, tag = 'scoped memory for net2_forward.1']
    #allocation5 [shape = 'u8[32768]{0}', space=vmem, size = 0x8000, scoped, tag = 'input window, operand 12, single buffered']
    #allocation6 [shape = 's32[1]{0}', space=sflag, size = 0x4, scoped, tag = 'scoped memory for net2_forward.1']
    #allocation7 [shape = 'u8[32768]{0}', space=vmem, size = 0x8000, scoped, tag = 'input window, operand 13, single buffered']
    #allocation8 [shape = 'u8[32768]{0}', space=vmem, size = 0x8000, scoped, tag = 'input window, operand 14, single buffered']
    #allocation9 [shape = 's32[1]{0}', space=sflag, size = 0x4, scoped, tag = 'scoped memory for net2_forward.1']
    #allocation10 [shape = 'u8[32768]{0}', space=vmem, size = 0x8000, scoped, tag = 'input window, operand 16, single buffered']
    #allocation11 [shape = 'u8[32768]{0}', space=vmem, size = 0x8000, scoped, tag = 'input window, operand 17, single buffered']
    #allocation12 [shape = 's32[1]{0}', space=sflag, size = 0x4, scoped, tag = 'scoped memory for net2_forward.1']
    #allocation13 [shape = 'u8[32768]{0}', space=vmem, size = 0x8000, scoped, tag = 'input window, operand 18, single buffered']
    #allocation14 [shape = 'u8[32768]{0}', space=vmem, size = 0x8000, scoped, tag = 'input window, operand 20, single buffered']
    #allocation15 [shape = 's32[1]{0}', space=sflag, size = 0x4, scoped, tag = 'scoped memory for net2_forward.1']
    #allocation16 [shape = 'u8[32768]{0}', space=vmem, size = 0x8000, scoped, tag = 'input window, operand 21, single buffered']
    #allocation17 [shape = 'u8[32768]{0}', space=vmem, size = 0x8000, scoped, tag = 'input window, operand 22, single buffered']
    #allocation18 [shape = 's32[1]{0}', space=sflag, size = 0x4, scoped, tag = 'scoped memory for net2_forward.1']
    #allocation19 [shape = 'u8[32768]{0}', space=vmem, size = 0x8000, scoped, tag = 'input window, operand 23, single buffered']
    #allocation20 [shape = 'u8[32768]{0}', space=vmem, size = 0x8000, scoped, tag = 'input window, operand 25, single buffered']
    #allocation21 [shape = 's32[1]{0}', space=sflag, size = 0x4, scoped, tag = 'scoped memory for net2_forward.1']
    #allocation22 [shape = 'u8[8192]{0}', space=vmem, size = 0x2000, scoped, tag = 'output window, operand 1, single buffered']
    #allocation23 [shape = 'u8[512]{0}', space=vmem, size = 0x400, scoped, tag = 'output window, operand 2, single buffered']
    #allocation24 [shape = 's32[1]{0}', space=sflag, size = 0x4, scoped, tag = 'scoped memory for net2_forward.1']
    %65 = vsyncpa [#allocation3], 0
    %66 = vsyncpa [#allocation6], 0
    %67 = vsyncpa [#allocation9], 0
    %68 = vsyncpa [#allocation12], 0
    %69 = vsyncpa [#allocation15], 0
    %70 = vsyncpa [#allocation18], 0
    %71 = vsyncpa [#allocation21], 0
    %72 = vsyncpa [#allocation4], 0
    %73 = vsyncpa [#allocation24], 0
    // Predicated region
    $region2: #{net2_forward.1} parent=1 // pred_check
      _
    $region3: #{net2_forward.1} parent=1 // pred_check_branch
      %75 = sbr.rel (0) target = $region5
    $region4: #{net2_forward.1} parent=1 // pred_region
      _
    $region5: #{net2_forward.1} parent=1 // pred_fallthru
      _
    // Predicated region
    $region6: #{net2_forward.1} parent=1 // pred_check
      _
    $region7: #{net2_forward.1} parent=1 // pred_check_branch
      %77 = sbr.rel (0) target = $region9
    $region8: #{net2_forward.1} parent=1 // pred_region
      _
    $region9: #{net2_forward.1} parent=1 // pred_fallthru
      _
    // Predicated region
    $region10: #{net2_forward.1} parent=1 // pred_check
      _
    $region11: #{net2_forward.1} parent=1 // pred_check_branch
      %79 = sbr.rel (0) target = $region13
    $region12: #{net2_forward.1} parent=1 // pred_region
      _
    $region13: #{net2_forward.1} parent=1 // pred_fallthru
      _
    // Predicated region
    $region14: #{net2_forward.1} parent=1 // pred_check
      _
    $region15: #{net2_forward.1} parent=1 // pred_check_branch
      %81 = sbr.rel (0) target = $region17
    $region16: #{net2_forward.1} parent=1 // pred_region
      _
    $region17: #{net2_forward.1} parent=1 // pred_fallthru
      _
    // Predicated region
    $region18: #{net2_forward.1} parent=1 // pred_check
      _
    $region19: #{net2_forward.1} parent=1 // pred_check_branch
      %83 = sbr.rel (0) target = $region21
    $region20: #{net2_forward.1} parent=1 // pred_region
      _
    $region21: #{net2_forward.1} parent=1 // pred_fallthru
      _
    // Predicated region
    $region22: #{net2_forward.1} parent=1 // pred_check
      _
    $region23: #{net2_forward.1} parent=1 // pred_check_branch
      %85 = sbr.rel (0) target = $region25
    $region24: #{net2_forward.1} parent=1 // pred_region
      _
    $region25: #{net2_forward.1} parent=1 // pred_fallthru
      _
    // Predicated region
    $region26: #{net2_forward.1} parent=1 // pred_check
      _
    $region27: #{net2_forward.1} parent=1 // pred_check_branch
      %87 = sbr.rel (0) target = $region29
    $region28: #{net2_forward.1} parent=1 // pred_region
      _
    $region29: #{net2_forward.1} parent=1 // pred_fallthru
      _
    // Predicated region
    $region30: #{net2_forward.1} parent=1 // pred_check
      _
    $region31: #{net2_forward.1} parent=1 // pred_check_branch
      %89 = sbr.rel (0) target = $region33
    $region32: #{net2_forward.1} parent=1 // pred_region
      _
    $region33: #{net2_forward.1} parent=1 // pred_fallthru
      _
    // Predicated region
    $region34: #{net2_forward.1} parent=1 // pred_check
      _
    $region35: #{net2_forward.1} parent=1 // pred_check_branch
      %91 = sbr.rel (0) target = $region37
    $region36: #{net2_forward.1} parent=1 // pred_region
      _
    $region37: #{net2_forward.1} parent=1 // pred_fallthru
      _
    // Predicated region
    $region38: #{net2_forward.1} parent=1 // pred_check
      _
    $region39: #{net2_forward.1} parent=1 // pred_check_branch
      %93 = sbr.rel (0) target = $region41
    $region40: #{net2_forward.1} parent=1 // pred_region
      _
    $region41: #{net2_forward.1} parent=1 // pred_fallthru
      _
    // Predicated region
    $region42: #{net2_forward.1} parent=1 // pred_check
      _
    $region43: #{net2_forward.1} parent=1 // pred_check_branch
      %95 = sbr.rel (0) target = $region45
    $region44: #{net2_forward.1} parent=1 // pred_region
      %s97 = ssub.s32 1024, 1024
      %98 = vsyncadd [#allocation3], %s97
      %s99 = sshll.u32 [#allocation2], 4
      %s100 = int_to_ptr.vmem [resolvable:$true] %s99
      %105 = dma.hbm_to_vmem [thread:$0]  %s21, 1024, %s100, [#allocation3], 64, 64, 4
    $region45: #{net2_forward.1} parent=1 // pred_fallthru
      _
    // Predicated region
    $region46: #{net2_forward.1} parent=1 // pred_check
      _
    $region47: #{net2_forward.1} parent=1 // pred_check_branch
      %107 = sbr.rel (0) target = $region49
    $region48: #{net2_forward.1} parent=1 // pred_region
      _
    $region49: #{net2_forward.1} parent=1 // pred_fallthru
      _
    // Predicated region
    $region50: #{net2_forward.1} parent=1 // pred_check
      _
    $region51: #{net2_forward.1} parent=1 // pred_check_branch
      %109 = sbr.rel (0) target = $region53
    $region52: #{net2_forward.1} parent=1 // pred_region
      %s111 = ssub.s32 1024, 1024
      %112 = vsyncadd [#allocation6], %s111
      %s113 = sshll.u32 [#allocation5], 4
      %s114 = int_to_ptr.vmem [resolvable:$true] %s113
      %119 = dma.hbm_to_vmem [thread:$0]  %s25, 1024, %s114, [#allocation6], 64, 64, 4
    $region53: #{net2_forward.1} parent=1 // pred_fallthru
      _
    // Predicated region
    $region54: #{net2_forward.1} parent=1 // pred_check
      _
    $region55: #{net2_forward.1} parent=1 // pred_check_branch
      %121 = sbr.rel (0) target = $region57
    $region56: #{net2_forward.1} parent=1 // pred_region
      %s123 = ssub.s32 1024, 1024
      %124 = vsyncadd [#allocation6], %s123
      %s125 = sshll.u32 [#allocation7], 4
      %s126 = int_to_ptr.vmem [resolvable:$true] %s125
      %131 = dma.hbm_to_vmem [thread:$0]  %s27, 1024, %s126, [#allocation6], 64, 64, 4
    $region57: #{net2_forward.1} parent=1 // pred_fallthru
      _
    // Predicated region
    $region58: #{net2_forward.1} parent=1 // pred_check
      _
    $region59: #{net2_forward.1} parent=1 // pred_check_branch
      %133 = sbr.rel (0) target = $region61
    $region60: #{net2_forward.1} parent=1 // pred_region
      %s135 = ssub.s32 1024, 1024
      %136 = vsyncadd [#allocation9], %s135
      %s137 = sshll.u32 [#allocation8], 4
      %s138 = int_to_ptr.vmem [resolvable:$true] %s137
      %143 = dma.hbm_to_vmem [thread:$0]  %s29, 1024, %s138, [#allocation9], 64, 64, 4
    $region61: #{net2_forward.1} parent=1 // pred_fallthru
      _
    // Predicated region
    $region62: #{net2_forward.1} parent=1 // pred_check
      _
    $region63: #{net2_forward.1} parent=1 // pred_check_branch
      %145 = sbr.rel (0) target = $region65
    $region64: #{net2_forward.1} parent=1 // pred_region
      _
    $region65: #{net2_forward.1} parent=1 // pred_fallthru
      _
    // Predicated region
    $region66: #{net2_forward.1} parent=1 // pred_check
      _
    $region67: #{net2_forward.1} parent=1 // pred_check_branch
      %147 = sbr.rel (0) target = $region69
    $region68: #{net2_forward.1} parent=1 // pred_region
      %s149 = ssub.s32 1024, 1024
      %150 = vsyncadd [#allocation9], %s149
      %s151 = sshll.u32 [#allocation10], 4
      %s152 = int_to_ptr.vmem [resolvable:$true] %s151
      %157 = dma.hbm_to_vmem [thread:$0]  %s33, 1024, %s152, [#allocation9], 64, 64, 4
    $region69: #{net2_forward.1} parent=1 // pred_fallthru
      _
    // Predicated region
    $region70: #{net2_forward.1} parent=1 // pred_check
      _
    $region71: #{net2_forward.1} parent=1 // pred_check_branch
      %159 = sbr.rel (0) target = $region73
    $region72: #{net2_forward.1} parent=1 // pred_region
      %s161 = ssub.s32 1024, 1024
      %162 = vsyncadd [#allocation12], %s161
      %s163 = sshll.u32 [#allocation11], 4
      %s164 = int_to_ptr.vmem [resolvable:$true] %s163
      %169 = dma.hbm_to_vmem [thread:$0]  %s35, 1024, %s164, [#allocation12], 64, 64, 4
    $region73: #{net2_forward.1} parent=1 // pred_fallthru
      _
    // Predicated region
    $region74: #{net2_forward.1} parent=1 // pred_check
      _
    $region75: #{net2_forward.1} parent=1 // pred_check_branch
      %171 = sbr.rel (0) target = $region77
    $region76: #{net2_forward.1} parent=1 // pred_region
      %s173 = ssub.s32 1024, 1024
      %174 = vsyncadd [#allocation12], %s173
      %s175 = sshll.u32 [#allocation13], 4
      %s176 = int_to_ptr.vmem [resolvable:$true] %s175
      %181 = dma.hbm_to_vmem [thread:$0]  %s37, 1024, %s176, [#allocation12], 64, 64, 4
    $region77: #{net2_forward.1} parent=1 // pred_fallthru
      _
    // Predicated region
    $region78: #{net2_forward.1} parent=1 // pred_check
      _
    $region79: #{net2_forward.1} parent=1 // pred_check_branch
      %183 = sbr.rel (0) target = $region81
    $region80: #{net2_forward.1} parent=1 // pred_region
      _
    $region81: #{net2_forward.1} parent=1 // pred_fallthru
      _
    // Predicated region
    $region82: #{net2_forward.1} parent=1 // pred_check
      _
    $region83: #{net2_forward.1} parent=1 // pred_check_branch
      %185 = sbr.rel (0) target = $region85
    $region84: #{net2_forward.1} parent=1 // pred_region
      %s187 = ssub.s32 1024, 1024
      %188 = vsyncadd [#allocation15], %s187
      %s189 = sshll.u32 [#allocation14], 4
      %s190 = int_to_ptr.vmem [resolvable:$true] %s189
      %195 = dma.hbm_to_vmem [thread:$0]  %s41, 1024, %s190, [#allocation15], 64, 64, 4
    $region85: #{net2_forward.1} parent=1 // pred_fallthru
      _
    // Predicated region
    $region86: #{net2_forward.1} parent=1 // pred_check
      _
    $region87: #{net2_forward.1} parent=1 // pred_check_branch
      %197 = sbr.rel (0) target = $region89
    $region88: #{net2_forward.1} parent=1 // pred_region
      %s199 = ssub.s32 1024, 1024
      %200 = vsyncadd [#allocation15], %s199
      %s201 = sshll.u32 [#allocation16], 4
      %s202 = int_to_ptr.vmem [resolvable:$true] %s201
      %207 = dma.hbm_to_vmem [thread:$0]  %s43, 1024, %s202, [#allocation15], 64, 64, 4
    $region89: #{net2_forward.1} parent=1 // pred_fallthru
      _
    // Predicated region
    $region90: #{net2_forward.1} parent=1 // pred_check
      _
    $region91: #{net2_forward.1} parent=1 // pred_check_branch
      %209 = sbr.rel (0) target = $region93
    $region92: #{net2_forward.1} parent=1 // pred_region
      %s211 = ssub.s32 1024, 1024
      %212 = vsyncadd [#allocation18], %s211
      %s213 = sshll.u32 [#allocation17], 4
      %s214 = int_to_ptr.vmem [resolvable:$true] %s213
      %219 = dma.hbm_to_vmem [thread:$0]  %s45, 1024, %s214, [#allocation18], 64, 64, 4
    $region93: #{net2_forward.1} parent=1 // pred_fallthru
      _
    // Predicated region
    $region94: #{net2_forward.1} parent=1 // pred_check
      _
    $region95: #{net2_forward.1} parent=1 // pred_check_branch
      %221 = sbr.rel (0) target = $region97
    $region96: #{net2_forward.1} parent=1 // pred_region
      %s223 = ssub.s32 1024, 1024
      %224 = vsyncadd [#allocation18], %s223
      %s225 = sshll.u32 [#allocation19], 4
      %s226 = int_to_ptr.vmem [resolvable:$true] %s225
      %231 = dma.hbm_to_vmem [thread:$0]  %s47, 1024, %s226, [#allocation18], 64, 64, 4
    $region97: #{net2_forward.1} parent=1 // pred_fallthru
      _
    // Predicated region
    $region98: #{net2_forward.1} parent=1 // pred_check
      _
    $region99: #{net2_forward.1} parent=1 // pred_check_branch
      %233 = sbr.rel (0) target = $region101
    $region100: #{net2_forward.1} parent=1 // pred_region
      _
    $region101: #{net2_forward.1} parent=1 // pred_fallthru
      _
    // Predicated region
    $region102: #{net2_forward.1} parent=1 // pred_check
      _
    $region103: #{net2_forward.1} parent=1 // pred_check_branch
      %235 = sbr.rel (0) target = $region105
    $region104: #{net2_forward.1} parent=1 // pred_region
      %s237 = ssub.s32 1024, 1024
      %238 = vsyncadd [#allocation21], %s237
      %s239 = sshll.u32 [#allocation20], 4
      %s240 = int_to_ptr.vmem [resolvable:$true] %s239
      %245 = dma.hbm_to_vmem [thread:$0]  %s51, 1024, %s240, [#allocation21], 64, 64, 4
    $region105: #{net2_forward.1} parent=1 // pred_fallthru
      _
    // Predicated region
    $region106: #{net2_forward.1} parent=1 // pred_check
      _
    $region107: #{net2_forward.1} parent=1 // pred_check_branch
      %247 = sbr.rel (0) target = $region109
    $region108: #{net2_forward.1} parent=1 // pred_region
      _
    $region109: #{net2_forward.1} parent=1 // pred_fallthru
      _
    // Predicated region
    $region110: #{net2_forward.1} parent=1 // pred_check
      _
    $region111: #{net2_forward.1} parent=1 // pred_check_branch
      %249 = sbr.rel (0) target = $region113
    $region112: #{net2_forward.1} parent=1 // pred_region
      %250 = dma.done [#allocation3], 1024
    $region113: #{net2_forward.1} parent=1 // pred_fallthru
      _
    // Predicated region
    $region114: #{net2_forward.1} parent=1 // pred_check
      _
    $region115: #{net2_forward.1} parent=1 // pred_check_branch
      %252 = sbr.rel (0) target = $region117
    $region116: #{net2_forward.1} parent=1 // pred_region
      %253 = dma.done [#allocation6], 1024
    $region117: #{net2_forward.1} parent=1 // pred_fallthru
      _
    // Predicated region
    $region118: #{net2_forward.1} parent=1 // pred_check
      _
    $region119: #{net2_forward.1} parent=1 // pred_check_branch
      %255 = sbr.rel (0) target = $region121
    $region120: #{net2_forward.1} parent=1 // pred_region
      %256 = dma.done [#allocation6], 1024
    $region121: #{net2_forward.1} parent=1 // pred_fallthru
      _
    // Predicated region
    $region122: #{net2_forward.1} parent=1 // pred_check
      _
    $region123: #{net2_forward.1} parent=1 // pred_check_branch
      %258 = sbr.rel (0) target = $region125
    $region124: #{net2_forward.1} parent=1 // pred_region
      %259 = dma.done [#allocation9], 1024
    $region125: #{net2_forward.1} parent=1 // pred_fallthru
      _
    // Predicated region
    $region126: #{net2_forward.1} parent=1 // pred_check
      _
    $region127: #{net2_forward.1} parent=1 // pred_check_branch
      %261 = sbr.rel (0) target = $region129
    $region128: #{net2_forward.1} parent=1 // pred_region
      %262 = dma.done [#allocation9], 1024
    $region129: #{net2_forward.1} parent=1 // pred_fallthru
      _
    // Predicated region
    $region130: #{net2_forward.1} parent=1 // pred_check
      _
    $region131: #{net2_forward.1} parent=1 // pred_check_branch
      %264 = sbr.rel (0) target = $region133
    $region132: #{net2_forward.1} parent=1 // pred_region
      %265 = dma.done [#allocation12], 1024
    $region133: #{net2_forward.1} parent=1 // pred_fallthru
      _
    // Predicated region
    $region134: #{net2_forward.1} parent=1 // pred_check
      _
    $region135: #{net2_forward.1} parent=1 // pred_check_branch
      %267 = sbr.rel (0) target = $region137
    $region136: #{net2_forward.1} parent=1 // pred_region
      %268 = dma.done [#allocation12], 1024
    $region137: #{net2_forward.1} parent=1 // pred_fallthru
      _
    // Predicated region
    $region138: #{net2_forward.1} parent=1 // pred_check
      _
    $region139: #{net2_forward.1} parent=1 // pred_check_branch
      %270 = sbr.rel (0) target = $region141
    $region140: #{net2_forward.1} parent=1 // pred_region
      %271 = dma.done [#allocation15], 1024
    $region141: #{net2_forward.1} parent=1 // pred_fallthru
      _
    // Predicated region
    $region142: #{net2_forward.1} parent=1 // pred_check
      _
    $region143: #{net2_forward.1} parent=1 // pred_check_branch
      %273 = sbr.rel (0) target = $region145
    $region144: #{net2_forward.1} parent=1 // pred_region
      %274 = dma.done [#allocation15], 1024
    $region145: #{net2_forward.1} parent=1 // pred_fallthru
      _
    // Predicated region
    $region146: #{net2_forward.1} parent=1 // pred_check
      _
    $region147: #{net2_forward.1} parent=1 // pred_check_branch
      %276 = sbr.rel (0) target = $region149
    $region148: #{net2_forward.1} parent=1 // pred_region
      %277 = dma.done [#allocation18], 1024
    $region149: #{net2_forward.1} parent=1 // pred_fallthru
      _
    // Predicated region
    $region150: #{net2_forward.1} parent=1 // pred_check
      _
    $region151: #{net2_forward.1} parent=1 // pred_check_branch
      %279 = sbr.rel (0) target = $region153
    $region152: #{net2_forward.1} parent=1 // pred_region
      %280 = dma.done [#allocation18], 1024
    $region153: #{net2_forward.1} parent=1 // pred_fallthru
      _
    // Predicated region
    $region154: #{net2_forward.1} parent=1 // pred_check
      _
    $region155: #{net2_forward.1} parent=1 // pred_check_branch
      %282 = sbr.rel (0) target = $region157
    $region156: #{net2_forward.1} parent=1 // pred_region
      %283 = dma.done [#allocation21], 1024
    $region157: #{net2_forward.1} parent=1 // pred_fallthru
      _
    %v285 = vld [vmem:[%s1] sm:$0xff]
    %v286 = vld [vmem:[%s3] sm:$0xff]
    %v287 = vld [vmem:[%s3 + $0x8] sm:$0xff]
    %v288 = vld [vmem:[%s5] sm:$0x1]
    %v289 = vpack.c.bf16 %v285, %v285
    %v290 = vpack.c.bf16 %v288, %v288
    %v291 = vlaneseq
    %v292 = vand.u32 %v291, 127
    %v293 = vld [vmem:[%s7] sm:$0xff]
    %v294 = vld [vmem:[%s7 + $0x8] sm:$0xff]
    %295 = vset.pattern.permute.xlu0 0
    %296 = vperm.xlu0 %295, %v293
    %v297 = vpop.permute.xlu0 %296
    %298 = vset.pattern.permute.xlu0 0
    %299 = vperm.xlu0 %298, %v294
    %v300 = vpop.permute.xlu0 %299
    %vm301 = vcmp.eq.s32.totalorder %v297, %v292
    %vm302 = vcmp.eq.s32.totalorder %v300, %v292
    %v303 = vsel %vm301, 1, 0
    %v304 = vsel %vm302, 1, 0
    %v305 = vcvt.s32.f32 %v303
    %v306 = vcvt.s32.f32 %v304
    %v307 = vld [vmem:[%s9] sm:$0xff]
    %v308 = vld [vmem:[%s9 + $0x8] sm:$0xff]
    %309 = vset.pattern.permute.xlu0 0
    %310 = vperm.xlu0 %309, %v307
    %v311 = vpop.permute.xlu0 %310
    %312 = vset.pattern.permute.xlu0 0
    %313 = vperm.xlu0 %312, %v308
    %v314 = vpop.permute.xlu0 %313
    %vm315 = vcmp.eq.s32.totalorder %v311, %v292
    %vm316 = vcmp.eq.s32.totalorder %v314, %v292
    %v317 = vsel %vm315, 1, 0
    %v318 = vsel %vm316, 1, 0
    %v319 = vcvt.s32.f32 %v317
    %v320 = vcvt.s32.f32 %v318
    %v321 = vlaneseq
    %v322 = vshrl.u32 %v321, 7
    %v323 = vld [vmem:[%s11] sm:$0x1]
    %v324 = vlaneseq
    %v325 = vshrl.u32 %v324, 7
    %v326 = vsub.s32 0, %v325
    %v327 = vrot.slane %v323, %v326
    %vm328 = vcmp.eq.s32.totalorder %v322, %v327
    %v329 = vsel %vm328, 1, 0
    %v330 = vcvt.s32.f32 %v329
    %v331 = vld [vmem:[%s13] sm:$0x1]
    %v332 = vlaneseq
    %v333 = vshrl.u32 %v332, 7
    %v334 = vsub.s32 0, %v333
    %v335 = vrot.slane %v331, %v334
    %vm336 = vcmp.eq.s32.totalorder %v322, %v335
    %v337 = vsel %vm336, 1, 0
    %v338 = vcvt.s32.f32 %v337
    %vm339 = vcmask 130048
    %v340 = vsel %vm339, %v330, 0.0
    %341 = vadd.xlane.f32.xlu0 %v340
    %v342 = vpop.xlane.xlu0 %341
    %v343 = vmax.f32 %v342, 1.0
    %v344 = vsel %vm339, %v338, 0.0
    %345 = vadd.xlane.f32.xlu0 %v344
    %v346 = vpop.xlane.xlu0 %345
    %v347 = vmax.f32 %v346, 1.0
    %v348 = vadd.s32 %v322, 8
    %vm349 = vcmp.lt.s32.totalorder %v322, 16
    %vm350 = vcmp.lt.s32.totalorder %v348, 16
    %v351 = vsel %vm349, 1, 0
    %v352 = vsel %vm350, 1, 0
    %v353 = vcvt.s32.f32 %v351
    %v354 = vcvt.s32.f32 %v352
    %vm355 = vcmp.lt.s32.totalorder %v322, 8
    %v356 = vsel %vm355, 1, 0
    %v357 = vcvt.s32.f32 %v356
    %vm358 = vcmask 64512
    %v360 = vsel %vm358, %v305, 0
    %v363 = vsel %vm358, %v306, 0
    %365 = vmatprep.subr.mxu0 0.0
    %366 = vmatpush1.msra.mxu0 0.0
    %367 = vmatprep.subr.mxu0 0.0
    %368 = vmatpush1.msra.mxu0 0.0
    %369 = vmatprep.subr.mxu0 0.0
    %370 = vmatpush1.msra.mxu0 0.0
    %371 = vmatprep.subr.mxu0 0.0
    %372 = vmatpush1.msra.mxu0 0.0
    %373 = vmatprep.subr.mxu0 0.0
    %374 = vmatpush1.msra.mxu0 0.0
    %375 = vmatprep.subr.mxu0 0.0
    %376 = vmatpush1.msra.mxu0 0.0
    %377 = vmatprep.subr.mxu0 0.0
    %378 = vmatpush1.msra.mxu0 0.0
    %379 = vmatprep.subr.mxu0 0.0
    %380 = vmatpush1.msra.mxu0 0.0
    %381 = vmatprep.subr.mxu0 0.0
    %382 = vmatpush1.msra.mxu0 0.0
    %383 = vmatprep.subr.mxu0 0.0
    %384 = vmatpush1.msra.mxu0 0.0
    %385 = vmatprep.subr.mxu0 0.0
    %386 = vmatpush1.msra.mxu0 0.0
    %387 = vmatprep.subr.mxu0 0.0
    %388 = vmatpush1.msra.mxu0 0.0
    %389 = vmatprep.subr.mxu0 0.0
    %390 = vmatpush1.msra.mxu0 0.0
    %391 = vmatprep.subr.mxu0 0.0
    %392 = vmatpush1.msra.mxu0 0.0
    %393 = vmatprep.subr.mxu0 0.0
    %394 = vmatpush1.msra.mxu0 0.0
    %395 = vmatprep.subr.mxu0 0.0
    %396 = vmatpush1.msra.mxu0 %v285
    %397 = vmatprep.subr.mxu0 0.0
    %398 = vmatpush2.msra.mxu0 0.0
    %399 = vmatprep.subr.mxu0 0.0
    %400 = vmatpush2.msra.mxu0 0.0
    %401 = vmatprep.subr.mxu0 0.0
    %402 = vmatpush2.msra.mxu0 0.0
    %403 = vmatprep.subr.mxu0 0.0
    %404 = vmatpush2.msra.mxu0 0.0
    %405 = vmatprep.subr.mxu0 0.0
    %406 = vmatpush2.msra.mxu0 0.0
    %407 = vmatprep.subr.mxu0 0.0
    %408 = vmatpush2.msra.mxu0 0.0
    %409 = vmatprep.subr.mxu0 0.0
    %410 = vmatpush2.msra.mxu0 0.0
    %411 = vmatprep.subr.mxu0 0.0
    %412 = vmatpush2.msra.mxu0 0.0
    %413 = vmatprep.subr.mxu0 0.0
    %414 = vmatpush2.msra.mxu0 0.0
    %415 = vmatprep.subr.mxu0 0.0
    %416 = vmatpush2.msra.mxu0 0.0
    %417 = vmatprep.subr.mxu0 0.0
    %418 = vmatpush2.msra.mxu0 0.0
    %419 = vmatprep.subr.mxu0 0.0
    %420 = vmatpush2.msra.mxu0 0.0
    %421 = vmatprep.subr.mxu0 0.0
    %422 = vmatpush2.msra.mxu0 0.0
    %423 = vmatprep.subr.mxu0 0.0
    %424 = vmatpush2.msra.mxu0 0.0
    %425 = vmatprep.subr.mxu0 0.0
    %426 = vmatpush2.msra.mxu0 0.0
    %427 = vmatprep.subr.mxu0 0.0
    %428 = vmatpush2.msra.mxu0 0.0
    %429 = vmatprep.mubr.f32.mxu0 0.0
    %430 = vmatmul.mubr.f32.gmra.mxu0 %v360
    %v431 = vpop.f32.mrf.mxu0
    %v432 = vadd.f32 0.0, %v431
    %v433 = vpop.f32.mrf.mxu0
    %434 = vmatprep.mubr.f32.mxu0 0.0
    %435 = vmatmul.mubr.f32.gmra.mxu0 %v363
    %v436 = vpop.f32.mrf.mxu0
    %v437 = vadd.f32 0.0, %v436
    %v438 = vpop.f32.mrf.mxu0
    %439 = vdwg.mxu0
    %v441 = vsel %vm358, %v319, 0
    %v444 = vsel %vm358, %v320, 0
    %446 = vmatprep.subr.mxu0 0.0
    %447 = vmatpush1.msra.mxu0 0.0
    %448 = vmatprep.subr.mxu0 0.0
    %449 = vmatpush1.msra.mxu0 0.0
    %450 = vmatprep.subr.mxu0 0.0
    %451 = vmatpush1.msra.mxu0 0.0
    %452 = vmatprep.subr.mxu0 0.0
    %453 = vmatpush1.msra.mxu0 0.0
    %454 = vmatprep.subr.mxu0 0.0
    %455 = vmatpush1.msra.mxu0 0.0
    %456 = vmatprep.subr.mxu0 0.0
    %457 = vmatpush1.msra.mxu0 0.0
    %458 = vmatprep.subr.mxu0 0.0
    %459 = vmatpush1.msra.mxu0 0.0
    %460 = vmatprep.subr.mxu0 0.0
    %461 = vmatpush1.msra.mxu0 0.0
    %462 = vmatprep.subr.mxu0 0.0
    %463 = vmatpush1.msra.mxu0 0.0
    %464 = vmatprep.subr.mxu0 0.0
    %465 = vmatpush1.msra.mxu0 0.0
    %466 = vmatprep.subr.mxu0 0.0
    %467 = vmatpush1.msra.mxu0 0.0
    %468 = vmatprep.subr.mxu0 0.0
    %469 = vmatpush1.msra.mxu0 0.0
    %470 = vmatprep.subr.mxu0 0.0
    %471 = vmatpush1.msra.mxu0 0.0
    %472 = vmatprep.subr.mxu0 0.0
    %473 = vmatpush1.msra.mxu0 0.0
    %474 = vmatprep.subr.mxu0 0.0
    %475 = vmatpush1.msra.mxu0 0.0
    %476 = vmatprep.subr.mxu0 0.0
    %477 = vmatpush1.msra.mxu0 %v285
    %478 = vmatprep.subr.mxu0 0.0
    %479 = vmatpush2.msra.mxu0 0.0
    %480 = vmatprep.subr.mxu0 0.0
    %481 = vmatpush2.msra.mxu0 0.0
    %482 = vmatprep.subr.mxu0 0.0
    %483 = vmatpush2.msra.mxu0 0.0
    %484 = vmatprep.subr.mxu0 0.0
    %485 = vmatpush2.msra.mxu0 0.0
    %486 = vmatprep.subr.mxu0 0.0
    %487 = vmatpush2.msra.mxu0 0.0
    %488 = vmatprep.subr.mxu0 0.0
    %489 = vmatpush2.msra.mxu0 0.0
    %490 = vmatprep.subr.mxu0 0.0
    %491 = vmatpush2.msra.mxu0 0.0
    %492 = vmatprep.subr.mxu0 0.0
    %493 = vmatpush2.msra.mxu0 0.0
    %494 = vmatprep.subr.mxu0 0.0
    %495 = vmatpush2.msra.mxu0 0.0
    %496 = vmatprep.subr.mxu0 0.0
    %497 = vmatpush2.msra.mxu0 0.0
    %498 = vmatprep.subr.mxu0 0.0
    %499 = vmatpush2.msra.mxu0 0.0
    %500 = vmatprep.subr.mxu0 0.0
    %501 = vmatpush2.msra.mxu0 0.0
    %502 = vmatprep.subr.mxu0 0.0
    %503 = vmatpush2.msra.mxu0 0.0
    %504 = vmatprep.subr.mxu0 0.0
    %505 = vmatpush2.msra.mxu0 0.0
    %506 = vmatprep.subr.mxu0 0.0
    %507 = vmatpush2.msra.mxu0 0.0
    %508 = vmatprep.subr.mxu0 0.0
    %509 = vmatpush2.msra.mxu0 0.0
    %510 = vmatprep.mubr.f32.mxu0 0.0
    %511 = vmatmul.mubr.f32.gmra.mxu0 %v441
    %v512 = vpop.f32.mrf.mxu0
    %v513 = vadd.f32 0.0, %v512
    %v514 = vpop.f32.mrf.mxu0
    %515 = vmatprep.mubr.f32.mxu0 0.0
    %516 = vmatmul.mubr.f32.gmra.mxu0 %v444
    %v517 = vpop.f32.mrf.mxu0
    %v518 = vadd.f32 0.0, %v517
    %v519 = vpop.f32.mrf.mxu0
    %520 = vdwg.mxu0
    %v521 = vpack.c.bf16 %v287, %v286
    %v522 = vld [vmem:[%s15] sm:$0xf]
    %v523 = vld [vmem:[%s15 + $0x4] sm:$0xf]
    %v524 = vld [vmem:[%s15 + $0x8] sm:$0xf]
    %v525 = vld [vmem:[%s15 + $0xc] sm:$0xf]
    %v526 = vld [vmem:[%s15 + $0x10] sm:$0xf]
    %v527 = vld [vmem:[%s15 + $0x14] sm:$0xf]
    %v528 = vld [vmem:[%s15 + $0x18] sm:$0xf]
    %v529 = vld [vmem:[%s15 + $0x1c] sm:$0xf]
    %v530 = vld [vmem:[%s15 + $0x20] sm:$0xf]
    %v531 = vld [vmem:[%s15 + $0x24] sm:$0xf]
    %v532 = vld [vmem:[%s15 + $0x28] sm:$0xf]
    %v533 = vld [vmem:[%s15 + $0x2c] sm:$0xf]
    %v534 = vld [vmem:[%s15 + $0x30] sm:$0xf]
    %v535 = vld [vmem:[%s15 + $0x34] sm:$0xf]
    %v536 = vld [vmem:[%s15 + $0x38] sm:$0xf]
    %v537 = vld [vmem:[%s15 + $0x3c] sm:$0xf]
    %v538 = vpack.c.bf16 %v437, %v432
    %v539 = vld [vmem:[%s17] sm:$0xf]
    %v540 = vld [vmem:[%s17 + $0x4] sm:$0xf]
    %v541 = vld [vmem:[%s17 + $0x8] sm:$0xf]
    %v542 = vld [vmem:[%s17 + $0xc] sm:$0xf]
    %v543 = vld [vmem:[%s17 + $0x10] sm:$0xf]
    %v544 = vld [vmem:[%s17 + $0x14] sm:$0xf]
    %v545 = vld [vmem:[%s17 + $0x18] sm:$0xf]
    %v546 = vld [vmem:[%s17 + $0x1c] sm:$0xf]
    %v547 = vld [vmem:[%s17 + $0x20] sm:$0xf]
    %v548 = vld [vmem:[%s17 + $0x24] sm:$0xf]
    %v549 = vld [vmem:[%s17 + $0x28] sm:$0xf]
    %v550 = vld [vmem:[%s17 + $0x2c] sm:$0xf]
    %v551 = vld [vmem:[%s17 + $0x30] sm:$0xf]
    %v552 = vld [vmem:[%s17 + $0x34] sm:$0xf]
    %v553 = vld [vmem:[%s17 + $0x38] sm:$0xf]
    %v554 = vld [vmem:[%s17 + $0x3c] sm:$0xf]
    %v571 = vunpack.c.l.b16 %v539
    %v572 = vunpack.c.l.b16 %v540
    %v573 = vunpack.c.l.b16 %v541
    %v574 = vunpack.c.l.b16 %v542
    %v575 = vunpack.c.l.b16 %v543
    %v576 = vunpack.c.l.b16 %v544
    %v577 = vunpack.c.l.b16 %v545
    %v578 = vunpack.c.l.b16 %v546
    %v579 = vunpack.c.l.b16 %v547
    %v580 = vunpack.c.l.b16 %v548
    %v581 = vunpack.c.l.b16 %v549
    %v582 = vunpack.c.l.b16 %v550
    %v583 = vunpack.c.l.b16 %v551
    %v584 = vunpack.c.l.b16 %v552
    %v585 = vunpack.c.l.b16 %v553
    %v586 = vunpack.c.l.b16 %v554
    %v587 = vpack.c.b16 %v572, %v571
    %v588 = vpack.c.b16 %v574, %v573
    %v589 = vpack.c.b16 %v576, %v575
    %v590 = vpack.c.b16 %v578, %v577
    %v591 = vpack.c.b16 %v580, %v579
    %v592 = vpack.c.b16 %v582, %v581
    %v593 = vpack.c.b16 %v584, %v583
    %v594 = vpack.c.b16 %v586, %v585
    %603 = vmatprep.subr.bf16.mxu0 0
    %604 = vmatpush1.bf16.msra.mxu0 %v594
    %605 = vmatprep.subr.bf16.mxu0 0
    %606 = vmatpush1.bf16.msra.mxu0 %v593
    %607 = vmatprep.subr.bf16.mxu0 0
    %608 = vmatpush1.bf16.msra.mxu0 %v592
    %609 = vmatprep.subr.bf16.mxu0 0
    %610 = vmatpush1.bf16.msra.mxu0 %v591
    %611 = vmatprep.subr.bf16.mxu0 0
    %612 = vmatpush1.bf16.msra.mxu0 %v590
    %613 = vmatprep.subr.bf16.mxu0 0
    %614 = vmatpush1.bf16.msra.mxu0 %v589
    %615 = vmatprep.subr.bf16.mxu0 0
    %616 = vmatpush1.bf16.msra.mxu0 %v588
    %617 = vmatprep.subr.bf16.mxu0 0
    %618 = vmatpush1.bf16.msra.mxu0 %v587
    %619 = vmatprep.subr.bf16.mxu0 0
    %620 = vmatpush2.bf16.msra.mxu0 0
    %621 = vmatprep.subr.bf16.mxu0 0
    %622 = vmatpush2.bf16.msra.mxu0 0
    %623 = vmatprep.subr.bf16.mxu0 0
    %624 = vmatpush2.bf16.msra.mxu0 0
    %625 = vmatprep.subr.bf16.mxu0 0
    %626 = vmatpush2.bf16.msra.mxu0 0
    %627 = vmatprep.subr.bf16.mxu0 0
    %628 = vmatpush2.bf16.msra.mxu0 0
    %629 = vmatprep.subr.bf16.mxu0 0
    %630 = vmatpush2.bf16.msra.mxu0 0
    %631 = vmatprep.subr.bf16.mxu0 0
    %632 = vmatpush2.bf16.msra.mxu0 0
    %633 = vmatprep.subr.bf16.mxu0 0
    %634 = vmatpush2.bf16.msra.mxu0 0
    %635 = vmatprep.mubr.bf16.mxu0 0
    %636 = vmatmul.mubr.bf16.gmra.mxu0 %v538
    %v637 = vpop.f32.mrf.mxu0
    %v638 = vadd.f32 0.0, %v637
    %v639 = vpop.f32.mrf.mxu0
    %v640 = vpop.f32.mrf.mxu0
    %v641 = vadd.f32 0.0, %v640
    %v642 = vpop.f32.mrf.mxu0
    %643 = vdwg.mxu0
    %v660 = vunpack.c.l.b16 %v522
    %v661 = vunpack.c.l.b16 %v523
    %v662 = vunpack.c.l.b16 %v524
    %v663 = vunpack.c.l.b16 %v525
    %v664 = vunpack.c.l.b16 %v526
    %v665 = vunpack.c.l.b16 %v527
    %v666 = vunpack.c.l.b16 %v528
    %v667 = vunpack.c.l.b16 %v529
    %v668 = vunpack.c.l.b16 %v530
    %v669 = vunpack.c.l.b16 %v531
    %v670 = vunpack.c.l.b16 %v532
    %v671 = vunpack.c.l.b16 %v533
    %v672 = vunpack.c.l.b16 %v534
    %v673 = vunpack.c.l.b16 %v535
    %v674 = vunpack.c.l.b16 %v536
    %v675 = vunpack.c.l.b16 %v537
    %v676 = vpack.c.b16 %v661, %v660
    %v677 = vpack.c.b16 %v663, %v662
    %v678 = vpack.c.b16 %v665, %v664
    %v679 = vpack.c.b16 %v667, %v666
    %v680 = vpack.c.b16 %v669, %v668
    %v681 = vpack.c.b16 %v671, %v670
    %v682 = vpack.c.b16 %v673, %v672
    %v683 = vpack.c.b16 %v675, %v674
    %692 = vmatprep.subr.bf16.mxu0 0
    %693 = vmatpush1.bf16.msra.mxu0 %v683
    %694 = vmatprep.subr.bf16.mxu0 0
    %695 = vmatpush1.bf16.msra.mxu0 %v682
    %696 = vmatprep.subr.bf16.mxu0 0
    %697 = vmatpush1.bf16.msra.mxu0 %v681
    %698 = vmatprep.subr.bf16.mxu0 0
    %699 = vmatpush1.bf16.msra.mxu0 %v680
    %700 = vmatprep.subr.bf16.mxu0 0
    %701 = vmatpush1.bf16.msra.mxu0 %v679
    %702 = vmatprep.subr.bf16.mxu0 0
    %703 = vmatpush1.bf16.msra.mxu0 %v678
    %704 = vmatprep.subr.bf16.mxu0 0
    %705 = vmatpush1.bf16.msra.mxu0 %v677
    %706 = vmatprep.subr.bf16.mxu0 0
    %707 = vmatpush1.bf16.msra.mxu0 %v676
    %708 = vmatprep.subr.bf16.mxu0 0
    %709 = vmatpush2.bf16.msra.mxu0 0
    %710 = vmatprep.subr.bf16.mxu0 0
    %711 = vmatpush2.bf16.msra.mxu0 0
    %712 = vmatprep.subr.bf16.mxu0 0
    %713 = vmatpush2.bf16.msra.mxu0 0
    %714 = vmatprep.subr.bf16.mxu0 0
    %715 = vmatpush2.bf16.msra.mxu0 0
    %716 = vmatprep.subr.bf16.mxu0 0
    %717 = vmatpush2.bf16.msra.mxu0 0
    %718 = vmatprep.subr.bf16.mxu0 0
    %719 = vmatpush2.bf16.msra.mxu0 0
    %720 = vmatprep.subr.bf16.mxu0 0
    %721 = vmatpush2.bf16.msra.mxu0 0
    %722 = vmatprep.subr.bf16.mxu0 0
    %723 = vmatpush2.bf16.msra.mxu0 0
    %724 = vmatprep.mubr.bf16.mxu0 0
    %725 = vmatmul.mubr.bf16.gmra.mxu0 %v521
    %v726 = vpop.f32.mrf.mxu0
    %v727 = vadd.f32 %v638, %v726
    %v728 = vpop.f32.mrf.mxu0
    %v729 = vpop.f32.mrf.mxu0
    %v730 = vadd.f32 %v641, %v729
    %v731 = vpop.f32.mrf.mxu0
    %732 = vdwg.mxu0
    %v733 = vpack.c.bf16 %v518, %v513
    %v734 = vld [vmem:[%s19] sm:$0xf]
    %v735 = vld [vmem:[%s19 + $0x4] sm:$0xf]
    %v736 = vld [vmem:[%s19 + $0x8] sm:$0xf]
    %v737 = vld [vmem:[%s19 + $0xc] sm:$0xf]
    %v738 = vld [vmem:[%s19 + $0x10] sm:$0xf]
    %v739 = vld [vmem:[%s19 + $0x14] sm:$0xf]
    %v740 = vld [vmem:[%s19 + $0x18] sm:$0xf]
    %v741 = vld [vmem:[%s19 + $0x1c] sm:$0xf]
    %v742 = vld [vmem:[%s19 + $0x20] sm:$0xf]
    %v743 = vld [vmem:[%s19 + $0x24] sm:$0xf]
    %v744 = vld [vmem:[%s19 + $0x28] sm:$0xf]
    %v745 = vld [vmem:[%s19 + $0x2c] sm:$0xf]
    %v746 = vld [vmem:[%s19 + $0x30] sm:$0xf]
    %v747 = vld [vmem:[%s19 + $0x34] sm:$0xf]
    %v748 = vld [vmem:[%s19 + $0x38] sm:$0xf]
    %v749 = vld [vmem:[%s19 + $0x3c] sm:$0xf]
    %v766 = vunpack.c.l.b16 %v734
    %v767 = vunpack.c.l.b16 %v735
    %v768 = vunpack.c.l.b16 %v736
    %v769 = vunpack.c.l.b16 %v737
    %v770 = vunpack.c.l.b16 %v738
    %v771 = vunpack.c.l.b16 %v739
    %v772 = vunpack.c.l.b16 %v740
    %v773 = vunpack.c.l.b16 %v741
    %v774 = vunpack.c.l.b16 %v742
    %v775 = vunpack.c.l.b16 %v743
    %v776 = vunpack.c.l.b16 %v744
    %v777 = vunpack.c.l.b16 %v745
    %v778 = vunpack.c.l.b16 %v746
    %v779 = vunpack.c.l.b16 %v747
    %v780 = vunpack.c.l.b16 %v748
    %v781 = vunpack.c.l.b16 %v749
    %v782 = vpack.c.b16 %v767, %v766
    %v783 = vpack.c.b16 %v769, %v768
    %v784 = vpack.c.b16 %v771, %v770
    %v785 = vpack.c.b16 %v773, %v772
    %v786 = vpack.c.b16 %v775, %v774
    %v787 = vpack.c.b16 %v777, %v776
    %v788 = vpack.c.b16 %v779, %v778
    %v789 = vpack.c.b16 %v781, %v780
    %798 = vmatprep.subr.bf16.mxu0 0
    %799 = vmatpush1.bf16.msra.mxu0 %v789
    %800 = vmatprep.subr.bf16.mxu0 0
    %801 = vmatpush1.bf16.msra.mxu0 %v788
    %802 = vmatprep.subr.bf16.mxu0 0
    %803 = vmatpush1.bf16.msra.mxu0 %v787
    %804 = vmatprep.subr.bf16.mxu0 0
    %805 = vmatpush1.bf16.msra.mxu0 %v786
    %806 = vmatprep.subr.bf16.mxu0 0
    %807 = vmatpush1.bf16.msra.mxu0 %v785
    %808 = vmatprep.subr.bf16.mxu0 0
    %809 = vmatpush1.bf16.msra.mxu0 %v784
    %810 = vmatprep.subr.bf16.mxu0 0
    %811 = vmatpush1.bf16.msra.mxu0 %v783
    %812 = vmatprep.subr.bf16.mxu0 0
    %813 = vmatpush1.bf16.msra.mxu0 %v782
    %814 = vmatprep.subr.bf16.mxu0 0
    %815 = vmatpush2.bf16.msra.mxu0 0
    %816 = vmatprep.subr.bf16.mxu0 0
    %817 = vmatpush2.bf16.msra.mxu0 0
    %818 = vmatprep.subr.bf16.mxu0 0
    %819 = vmatpush2.bf16.msra.mxu0 0
    %820 = vmatprep.subr.bf16.mxu0 0
    %821 = vmatpush2.bf16.msra.mxu0 0
    %822 = vmatprep.subr.bf16.mxu0 0
    %823 = vmatpush2.bf16.msra.mxu0 0
    %824 = vmatprep.subr.bf16.mxu0 0
    %825 = vmatpush2.bf16.msra.mxu0 0
    %826 = vmatprep.subr.bf16.mxu0 0
    %827 = vmatpush2.bf16.msra.mxu0 0
    %828 = vmatprep.subr.bf16.mxu0 0
    %829 = vmatpush2.bf16.msra.mxu0 0
    %830 = vmatprep.mubr.bf16.mxu0 0
    %831 = vmatmul.mubr.bf16.gmra.mxu0 %v733
    %v832 = vpop.f32.mrf.mxu0
    %v833 = vadd.f32 0.0, %v832
    %v834 = vpop.f32.mrf.mxu0
    %v835 = vpop.f32.mrf.mxu0
    %v836 = vadd.f32 0.0, %v835
    %v837 = vpop.f32.mrf.mxu0
    %838 = vdwg.mxu0
    %v839 = vadd.f32 %v727, %v833
    %v840 = vadd.f32 %v730, %v836
    %v841 = vld [vmem:[#allocation2] sm:$0xf]
    %v842 = vld [vmem:[#allocation2 + $0x4] sm:$0xf]
    %v843 = vld [vmem:[#allocation2 + $0x8] sm:$0xf]
    %v844 = vld [vmem:[#allocation2 + $0xc] sm:$0xf]
    %v845 = vld [vmem:[#allocation2 + $0x10] sm:$0xf]
    %v846 = vld [vmem:[#allocation2 + $0x14] sm:$0xf]
    %v847 = vld [vmem:[#allocation2 + $0x18] sm:$0xf]
    %v848 = vld [vmem:[#allocation2 + $0x1c] sm:$0xf]
    %v849 = vld [vmem:[#allocation2 + $0x20] sm:$0xf]
    %v850 = vld [vmem:[#allocation2 + $0x24] sm:$0xf]
    %v851 = vld [vmem:[#allocation2 + $0x28] sm:$0xf]
    %v852 = vld [vmem:[#allocation2 + $0x2c] sm:$0xf]
    %v853 = vld [vmem:[#allocation2 + $0x30] sm:$0xf]
    %v854 = vld [vmem:[#allocation2 + $0x34] sm:$0xf]
    %v855 = vld [vmem:[#allocation2 + $0x38] sm:$0xf]
    %v856 = vld [vmem:[#allocation2 + $0x3c] sm:$0xf]
    %v873 = vunpack.c.l.b16 %v841
    %v874 = vunpack.c.l.b16 %v842
    %v875 = vunpack.c.l.b16 %v843
    %v876 = vunpack.c.l.b16 %v844
    %v877 = vunpack.c.l.b16 %v845
    %v878 = vunpack.c.l.b16 %v846
    %v879 = vunpack.c.l.b16 %v847
    %v880 = vunpack.c.l.b16 %v848
    %v881 = vunpack.c.l.b16 %v849
    %v882 = vunpack.c.l.b16 %v850
    %v883 = vunpack.c.l.b16 %v851
    %v884 = vunpack.c.l.b16 %v852
    %v885 = vunpack.c.l.b16 %v853
    %v886 = vunpack.c.l.b16 %v854
    %v887 = vunpack.c.l.b16 %v855
    %v888 = vunpack.c.l.b16 %v856
    %v889 = vpack.c.b16 %v874, %v873
    %v890 = vpack.c.b16 %v876, %v875
    %v891 = vpack.c.b16 %v878, %v877
    %v892 = vpack.c.b16 %v880, %v879
    %v893 = vpack.c.b16 %v882, %v881
    %v894 = vpack.c.b16 %v884, %v883
    %v895 = vpack.c.b16 %v886, %v885
    %v896 = vpack.c.b16 %v888, %v887
    %905 = vmatprep.subr.bf16.mxu0 0
    %906 = vmatpush1.bf16.msra.mxu0 %v896
    %907 = vmatprep.subr.bf16.mxu0 0
    %908 = vmatpush1.bf16.msra.mxu0 %v895
    %909 = vmatprep.subr.bf16.mxu0 0
    %910 = vmatpush1.bf16.msra.mxu0 %v894
    %911 = vmatprep.subr.bf16.mxu0 0
    %912 = vmatpush1.bf16.msra.mxu0 %v893
    %913 = vmatprep.subr.bf16.mxu0 0
    %914 = vmatpush1.bf16.msra.mxu0 %v892
    %915 = vmatprep.subr.bf16.mxu0 0
    %916 = vmatpush1.bf16.msra.mxu0 %v891
    %917 = vmatprep.subr.bf16.mxu0 0
    %918 = vmatpush1.bf16.msra.mxu0 %v890
    %919 = vmatprep.subr.bf16.mxu0 0
    %920 = vmatpush1.bf16.msra.mxu0 %v889
    %921 = vmatprep.subr.bf16.mxu0 0
    %922 = vmatpush2.bf16.msra.mxu0 0
    %923 = vmatprep.subr.bf16.mxu0 0
    %924 = vmatpush2.bf16.msra.mxu0 0
    %925 = vmatprep.subr.bf16.mxu0 0
    %926 = vmatpush2.bf16.msra.mxu0 0
    %927 = vmatprep.subr.bf16.mxu0 0
    %928 = vmatpush2.bf16.msra.mxu0 0
    %929 = vmatprep.subr.bf16.mxu0 0
    %930 = vmatpush2.bf16.msra.mxu0 0
    %931 = vmatprep.subr.bf16.mxu0 0
    %932 = vmatpush2.bf16.msra.mxu0 0
    %933 = vmatprep.subr.bf16.mxu0 0
    %934 = vmatpush2.bf16.msra.mxu0 0
    %935 = vmatprep.subr.bf16.mxu0 0
    %936 = vmatpush2.bf16.msra.mxu0 0
    %937 = vmatprep.mubr.bf16.mxu0 0
    %938 = vmatmul.mubr.bf16.gmra.mxu0 %v290
    %v939 = vpop.f32.mrf.mxu0
    %v940 = vadd.f32 0.0, %v939
    %v941 = vpop.f32.mrf.mxu0
    %v942 = vpop.f32.mrf.mxu0
    %v943 = vpop.f32.mrf.mxu0
    %944 = vdwg.mxu0
    %v945 = vlaneseq
    %v946 = vshrl.u32 %v945, 7
    %v947 = vsub.s32 0, %v946
    %v948 = vrot.slane %v940, %v947
    %v949 = vadd.f32 %v839, %v948
    %v950 = vadd.f32 %v840, %v948
    %v951 = vld [vmem:[%s23] sm:$0x1]
    %v953 = vlaneseq
    %v954 = vshrl.u32 %v953, 7
    %v955 = vsub.s32 0, %v954
    %v956 = vrot.slane %v951, %v955
    %v958 = vadd.f32 %v949, %v956
    %v959 = vadd.f32 %v950, %v956
    %v960 = vmax.f32 %v958, 0.0
    %v961 = vmax.f32 %v959, 0.0
    %v962 = vmul.f32 %v960, %v353
    %v963 = vmul.f32 %v961, %v354
    %v965 = vsel %vm339, %v330, 0
    %967 = vmatprep.subr.mxu0 0.0
    %968 = vmatpush1.msra.mxu0 0.0
    %969 = vmatprep.subr.mxu0 0.0
    %970 = vmatpush1.msra.mxu0 0.0
    %971 = vmatprep.subr.mxu0 0.0
    %972 = vmatpush1.msra.mxu0 0.0
    %973 = vmatprep.subr.mxu0 0.0
    %974 = vmatpush1.msra.mxu0 0.0
    %975 = vmatprep.subr.mxu0 0.0
    %976 = vmatpush1.msra.mxu0 0.0
    %977 = vmatprep.subr.mxu0 0.0
    %978 = vmatpush1.msra.mxu0 0.0
    %979 = vmatprep.subr.mxu0 0.0
    %980 = vmatpush1.msra.mxu0 0.0
    %981 = vmatprep.subr.mxu0 0.0
    %982 = vmatpush1.msra.mxu0 0.0
    %983 = vmatprep.subr.mxu0 0.0
    %984 = vmatpush1.msra.mxu0 0.0
    %985 = vmatprep.subr.mxu0 0.0
    %986 = vmatpush1.msra.mxu0 0.0
    %987 = vmatprep.subr.mxu0 0.0
    %988 = vmatpush1.msra.mxu0 0.0
    %989 = vmatprep.subr.mxu0 0.0
    %990 = vmatpush1.msra.mxu0 0.0
    %991 = vmatprep.subr.mxu0 0.0
    %992 = vmatpush1.msra.mxu0 0.0
    %993 = vmatprep.subr.mxu0 0.0
    %994 = vmatpush1.msra.mxu0 0.0
    %995 = vmatprep.subr.mxu0 0.0
    %996 = vmatpush1.msra.mxu0 %v963
    %997 = vmatprep.subr.mxu0 0.0
    %998 = vmatpush1.msra.mxu0 %v962
    %999 = vmatprep.subr.mxu0 0.0
    %1000 = vmatpush2.msra.mxu0 0.0
    %1001 = vmatprep.subr.mxu0 0.0
    %1002 = vmatpush2.msra.mxu0 0.0
    %1003 = vmatprep.subr.mxu0 0.0
    %1004 = vmatpush2.msra.mxu0 0.0
    %1005 = vmatprep.subr.mxu0 0.0
    %1006 = vmatpush2.msra.mxu0 0.0
    %1007 = vmatprep.subr.mxu0 0.0
    %1008 = vmatpush2.msra.mxu0 0.0
    %1009 = vmatprep.subr.mxu0 0.0
    %1010 = vmatpush2.msra.mxu0 0.0
    %1011 = vmatprep.subr.mxu0 0.0
    %1012 = vmatpush2.msra.mxu0 0.0
    %1013 = vmatprep.subr.mxu0 0.0
    %1014 = vmatpush2.msra.mxu0 0.0
    %1015 = vmatprep.subr.mxu0 0.0
    %1016 = vmatpush2.msra.mxu0 0.0
    %1017 = vmatprep.subr.mxu0 0.0
    %1018 = vmatpush2.msra.mxu0 0.0
    %1019 = vmatprep.subr.mxu0 0.0
    %1020 = vmatpush2.msra.mxu0 0.0
    %1021 = vmatprep.subr.mxu0 0.0
    %1022 = vmatpush2.msra.mxu0 0.0
    %1023 = vmatprep.subr.mxu0 0.0
    %1024 = vmatpush2.msra.mxu0 0.0
    %1025 = vmatprep.subr.mxu0 0.0
    %1026 = vmatpush2.msra.mxu0 0.0
    %1027 = vmatprep.subr.mxu0 0.0
    %1028 = vmatpush2.msra.mxu0 0.0
    %1029 = vmatprep.subr.mxu0 0.0
    %1030 = vmatpush2.msra.mxu0 0.0
    %1031 = vmatprep.mubr.f32.mxu0 0.0
    %1032 = vmatmul.mubr.f32.gmra.mxu0 %v965
    %v1033 = vpop.f32.mrf.mxu0
    %v1034 = vadd.f32 0.0, %v1033
    %v1035 = vpop.f32.mrf.mxu0
    %1036 = vdwg.mxu0
    %v1037 = vpack.c.bf16 %v1034, %v1034
    %v1038 = vld [vmem:[#allocation5] sm:$0xf]
    %v1039 = vld [vmem:[#allocation5 + $0x4] sm:$0xf]
    %v1040 = vld [vmem:[#allocation5 + $0x8] sm:$0xf]
    %v1041 = vld [vmem:[#allocation5 + $0xc] sm:$0xf]
    %v1042 = vld [vmem:[#allocation5 + $0x10] sm:$0xf]
    %v1043 = vld [vmem:[#allocation5 + $0x14] sm:$0xf]
    %v1044 = vld [vmem:[#allocation5 + $0x18] sm:$0xf]
    %v1045 = vld [vmem:[#allocation5 + $0x1c] sm:$0xf]
    %v1046 = vld [vmem:[#allocation5 + $0x20] sm:$0xf]
    %v1047 = vld [vmem:[#allocation5 + $0x24] sm:$0xf]
    %v1048 = vld [vmem:[#allocation5 + $0x28] sm:$0xf]
    %v1049 = vld [vmem:[#allocation5 + $0x2c] sm:$0xf]
    %v1050 = vld [vmem:[#allocation5 + $0x30] sm:$0xf]
    %v1051 = vld [vmem:[#allocation5 + $0x34] sm:$0xf]
    %v1052 = vld [vmem:[#allocation5 + $0x38] sm:$0xf]
    %v1053 = vld [vmem:[#allocation5 + $0x3c] sm:$0xf]
    %v1054 = vld [vmem:[#allocation7] sm:$0xf]
    %v1055 = vld [vmem:[#allocation7 + $0x4] sm:$0xf]
    %v1056 = vld [vmem:[#allocation7 + $0x8] sm:$0xf]
    %v1057 = vld [vmem:[#allocation7 + $0xc] sm:$0xf]
    %v1058 = vld [vmem:[#allocation7 + $0x10] sm:$0xf]
    %v1059 = vld [vmem:[#allocation7 + $0x14] sm:$0xf]
    %v1060 = vld [vmem:[#allocation7 + $0x18] sm:$0xf]
    %v1061 = vld [vmem:[#allocation7 + $0x1c] sm:$0xf]
    %v1062 = vld [vmem:[#allocation7 + $0x20] sm:$0xf]
    %v1063 = vld [vmem:[#allocation7 + $0x24] sm:$0xf]
    %v1064 = vld [vmem:[#allocation7 + $0x28] sm:$0xf]
    %v1065 = vld [vmem:[#allocation7 + $0x2c] sm:$0xf]
    %v1066 = vld [vmem:[#allocation7 + $0x30] sm:$0xf]
    %v1067 = vld [vmem:[#allocation7 + $0x34] sm:$0xf]
    %v1068 = vld [vmem:[#allocation7 + $0x38] sm:$0xf]
    %v1069 = vld [vmem:[#allocation7 + $0x3c] sm:$0xf]
    %v1086 = vunpack.c.l.b16 %v1054
    %v1087 = vunpack.c.l.b16 %v1055
    %v1088 = vunpack.c.l.b16 %v1056
    %v1089 = vunpack.c.l.b16 %v1057
    %v1090 = vunpack.c.l.b16 %v1058
    %v1091 = vunpack.c.l.b16 %v1059
    %v1092 = vunpack.c.l.b16 %v1060
    %v1093 = vunpack.c.l.b16 %v1061
    %v1094 = vunpack.c.l.b16 %v1062
    %v1095 = vunpack.c.l.b16 %v1063
    %v1096 = vunpack.c.l.b16 %v1064
    %v1097 = vunpack.c.l.b16 %v1065
    %v1098 = vunpack.c.l.b16 %v1066
    %v1099 = vunpack.c.l.b16 %v1067
    %v1100 = vunpack.c.l.b16 %v1068
    %v1101 = vunpack.c.l.b16 %v1069
    %v1102 = vpack.c.b16 %v1087, %v1086
    %v1103 = vpack.c.b16 %v1089, %v1088
    %v1104 = vpack.c.b16 %v1091, %v1090
    %v1105 = vpack.c.b16 %v1093, %v1092
    %v1106 = vpack.c.b16 %v1095, %v1094
    %v1107 = vpack.c.b16 %v1097, %v1096
    %v1108 = vpack.c.b16 %v1099, %v1098
    %v1109 = vpack.c.b16 %v1101, %v1100
    %1118 = vmatprep.subr.bf16.mxu0 0
    %1119 = vmatpush1.bf16.msra.mxu0 %v1109
    %1120 = vmatprep.subr.bf16.mxu0 0
    %1121 = vmatpush1.bf16.msra.mxu0 %v1108
    %1122 = vmatprep.subr.bf16.mxu0 0
    %1123 = vmatpush1.bf16.msra.mxu0 %v1107
    %1124 = vmatprep.subr.bf16.mxu0 0
    %1125 = vmatpush1.bf16.msra.mxu0 %v1106
    %1126 = vmatprep.subr.bf16.mxu0 0
    %1127 = vmatpush1.bf16.msra.mxu0 %v1105
    %1128 = vmatprep.subr.bf16.mxu0 0
    %1129 = vmatpush1.bf16.msra.mxu0 %v1104
    %1130 = vmatprep.subr.bf16.mxu0 0
    %1131 = vmatpush1.bf16.msra.mxu0 %v1103
    %1132 = vmatprep.subr.bf16.mxu0 0
    %1133 = vmatpush1.bf16.msra.mxu0 %v1102
    %1134 = vmatprep.subr.bf16.mxu0 0
    %1135 = vmatpush2.bf16.msra.mxu0 0
    %1136 = vmatprep.subr.bf16.mxu0 0
    %1137 = vmatpush2.bf16.msra.mxu0 0
    %1138 = vmatprep.subr.bf16.mxu0 0
    %1139 = vmatpush2.bf16.msra.mxu0 0
    %1140 = vmatprep.subr.bf16.mxu0 0
    %1141 = vmatpush2.bf16.msra.mxu0 0
    %1142 = vmatprep.subr.bf16.mxu0 0
    %1143 = vmatpush2.bf16.msra.mxu0 0
    %1144 = vmatprep.subr.bf16.mxu0 0
    %1145 = vmatpush2.bf16.msra.mxu0 0
    %1146 = vmatprep.subr.bf16.mxu0 0
    %1147 = vmatpush2.bf16.msra.mxu0 0
    %1148 = vmatprep.subr.bf16.mxu0 0
    %1149 = vmatpush2.bf16.msra.mxu0 0
    %1150 = vmatprep.mubr.bf16.mxu0 0
    %1151 = vmatmul.mubr.bf16.gmra.mxu0 %v289
    %v1152 = vpop.f32.mrf.mxu0
    %v1153 = vadd.f32 0.0, %v1152
    %v1154 = vpop.f32.mrf.mxu0
    %v1155 = vpop.f32.mrf.mxu0
    %v1156 = vpop.f32.mrf.mxu0
    %1157 = vdwg.mxu0
    %v1174 = vunpack.c.l.b16 %v1038
    %v1175 = vunpack.c.l.b16 %v1039
    %v1176 = vunpack.c.l.b16 %v1040
    %v1177 = vunpack.c.l.b16 %v1041
    %v1178 = vunpack.c.l.b16 %v1042
    %v1179 = vunpack.c.l.b16 %v1043
    %v1180 = vunpack.c.l.b16 %v1044
    %v1181 = vunpack.c.l.b16 %v1045
    %v1182 = vunpack.c.l.b16 %v1046
    %v1183 = vunpack.c.l.b16 %v1047
    %v1184 = vunpack.c.l.b16 %v1048
    %v1185 = vunpack.c.l.b16 %v1049
    %v1186 = vunpack.c.l.b16 %v1050
    %v1187 = vunpack.c.l.b16 %v1051
    %v1188 = vunpack.c.l.b16 %v1052
    %v1189 = vunpack.c.l.b16 %v1053
    %v1190 = vpack.c.b16 %v1175, %v1174
    %v1191 = vpack.c.b16 %v1177, %v1176
    %v1192 = vpack.c.b16 %v1179, %v1178
    %v1193 = vpack.c.b16 %v1181, %v1180
    %v1194 = vpack.c.b16 %v1183, %v1182
    %v1195 = vpack.c.b16 %v1185, %v1184
    %v1196 = vpack.c.b16 %v1187, %v1186
    %v1197 = vpack.c.b16 %v1189, %v1188
    %1206 = vmatprep.subr.bf16.mxu0 0
    %1207 = vmatpush1.bf16.msra.mxu0 %v1197
    %1208 = vmatprep.subr.bf16.mxu0 0
    %1209 = vmatpush1.bf16.msra.mxu0 %v1196
    %1210 = vmatprep.subr.bf16.mxu0 0
    %1211 = vmatpush1.bf16.msra.mxu0 %v1195
    %1212 = vmatprep.subr.bf16.mxu0 0
    %1213 = vmatpush1.bf16.msra.mxu0 %v1194
    %1214 = vmatprep.subr.bf16.mxu0 0
    %1215 = vmatpush1.bf16.msra.mxu0 %v1193
    %1216 = vmatprep.subr.bf16.mxu0 0
    %1217 = vmatpush1.bf16.msra.mxu0 %v1192
    %1218 = vmatprep.subr.bf16.mxu0 0
    %1219 = vmatpush1.bf16.msra.mxu0 %v1191
    %1220 = vmatprep.subr.bf16.mxu0 0
    %1221 = vmatpush1.bf16.msra.mxu0 %v1190
    %1222 = vmatprep.subr.bf16.mxu0 0
    %1223 = vmatpush2.bf16.msra.mxu0 0
    %1224 = vmatprep.subr.bf16.mxu0 0
    %1225 = vmatpush2.bf16.msra.mxu0 0
    %1226 = vmatprep.subr.bf16.mxu0 0
    %1227 = vmatpush2.bf16.msra.mxu0 0
    %1228 = vmatprep.subr.bf16.mxu0 0
    %1229 = vmatpush2.bf16.msra.mxu0 0
    %1230 = vmatprep.subr.bf16.mxu0 0
    %1231 = vmatpush2.bf16.msra.mxu0 0
    %1232 = vmatprep.subr.bf16.mxu0 0
    %1233 = vmatpush2.bf16.msra.mxu0 0
    %1234 = vmatprep.subr.bf16.mxu0 0
    %1235 = vmatpush2.bf16.msra.mxu0 0
    %1236 = vmatprep.subr.bf16.mxu0 0
    %1237 = vmatpush2.bf16.msra.mxu0 0
    %1238 = vmatprep.mubr.bf16.mxu0 0
    %1239 = vmatmul.mubr.bf16.gmra.mxu0 %v1037
    %v1240 = vpop.f32.mrf.mxu0
    %v1241 = vadd.f32 %v1153, %v1240
    %v1242 = vpop.f32.mrf.mxu0
    %v1243 = vpop.f32.mrf.mxu0
    %v1244 = vpop.f32.mrf.mxu0
    %1245 = vdwg.mxu0
    %v1246 = vld [vmem:[#allocation8] sm:$0xf]
    %v1247 = vld [vmem:[#allocation8 + $0x4] sm:$0xf]
    %v1248 = vld [vmem:[#allocation8 + $0x8] sm:$0xf]
    %v1249 = vld [vmem:[#allocation8 + $0xc] sm:$0xf]
    %v1250 = vld [vmem:[#allocation8 + $0x10] sm:$0xf]
    %v1251 = vld [vmem:[#allocation8 + $0x14] sm:$0xf]
    %v1252 = vld [vmem:[#allocation8 + $0x18] sm:$0xf]
    %v1253 = vld [vmem:[#allocation8 + $0x1c] sm:$0xf]
    %v1254 = vld [vmem:[#allocation8 + $0x20] sm:$0xf]
    %v1255 = vld [vmem:[#allocation8 + $0x24] sm:$0xf]
    %v1256 = vld [vmem:[#allocation8 + $0x28] sm:$0xf]
    %v1257 = vld [vmem:[#allocation8 + $0x2c] sm:$0xf]
    %v1258 = vld [vmem:[#allocation8 + $0x30] sm:$0xf]
    %v1259 = vld [vmem:[#allocation8 + $0x34] sm:$0xf]
    %v1260 = vld [vmem:[#allocation8 + $0x38] sm:$0xf]
    %v1261 = vld [vmem:[#allocation8 + $0x3c] sm:$0xf]
    %v1278 = vunpack.c.l.b16 %v1246
    %v1279 = vunpack.c.l.b16 %v1247
    %v1280 = vunpack.c.l.b16 %v1248
    %v1281 = vunpack.c.l.b16 %v1249
    %v1282 = vunpack.c.l.b16 %v1250
    %v1283 = vunpack.c.l.b16 %v1251
    %v1284 = vunpack.c.l.b16 %v1252
    %v1285 = vunpack.c.l.b16 %v1253
    %v1286 = vunpack.c.l.b16 %v1254
    %v1287 = vunpack.c.l.b16 %v1255
    %v1288 = vunpack.c.l.b16 %v1256
    %v1289 = vunpack.c.l.b16 %v1257
    %v1290 = vunpack.c.l.b16 %v1258
    %v1291 = vunpack.c.l.b16 %v1259
    %v1292 = vunpack.c.l.b16 %v1260
    %v1293 = vunpack.c.l.b16 %v1261
    %v1294 = vpack.c.b16 %v1279, %v1278
    %v1295 = vpack.c.b16 %v1281, %v1280
    %v1296 = vpack.c.b16 %v1283, %v1282
    %v1297 = vpack.c.b16 %v1285, %v1284
    %v1298 = vpack.c.b16 %v1287, %v1286
    %v1299 = vpack.c.b16 %v1289, %v1288
    %v1300 = vpack.c.b16 %v1291, %v1290
    %v1301 = vpack.c.b16 %v1293, %v1292
    %1310 = vmatprep.subr.bf16.mxu0 0
    %1311 = vmatpush1.bf16.msra.mxu0 %v1301
    %1312 = vmatprep.subr.bf16.mxu0 0
    %1313 = vmatpush1.bf16.msra.mxu0 %v1300
    %1314 = vmatprep.subr.bf16.mxu0 0
    %1315 = vmatpush1.bf16.msra.mxu0 %v1299
    %1316 = vmatprep.subr.bf16.mxu0 0
    %1317 = vmatpush1.bf16.msra.mxu0 %v1298
    %1318 = vmatprep.subr.bf16.mxu0 0
    %1319 = vmatpush1.bf16.msra.mxu0 %v1297
    %1320 = vmatprep.subr.bf16.mxu0 0
    %1321 = vmatpush1.bf16.msra.mxu0 %v1296
    %1322 = vmatprep.subr.bf16.mxu0 0
    %1323 = vmatpush1.bf16.msra.mxu0 %v1295
    %1324 = vmatprep.subr.bf16.mxu0 0
    %1325 = vmatpush1.bf16.msra.mxu0 %v1294
    %1326 = vmatprep.subr.bf16.mxu0 0
    %1327 = vmatpush2.bf16.msra.mxu0 0
    %1328 = vmatprep.subr.bf16.mxu0 0
    %1329 = vmatpush2.bf16.msra.mxu0 0
    %1330 = vmatprep.subr.bf16.mxu0 0
    %1331 = vmatpush2.bf16.msra.mxu0 0
    %1332 = vmatprep.subr.bf16.mxu0 0
    %1333 = vmatpush2.bf16.msra.mxu0 0
    %1334 = vmatprep.subr.bf16.mxu0 0
    %1335 = vmatpush2.bf16.msra.mxu0 0
    %1336 = vmatprep.subr.bf16.mxu0 0
    %1337 = vmatpush2.bf16.msra.mxu0 0
    %1338 = vmatprep.subr.bf16.mxu0 0
    %1339 = vmatpush2.bf16.msra.mxu0 0
    %1340 = vmatprep.subr.bf16.mxu0 0
    %1341 = vmatpush2.bf16.msra.mxu0 0
    %1342 = vmatprep.mubr.bf16.mxu0 0
    %1343 = vmatmul.mubr.bf16.gmra.mxu0 %v290
    %v1344 = vpop.f32.mrf.mxu0
    %v1345 = vadd.f32 0.0, %v1344
    %v1346 = vpop.f32.mrf.mxu0
    %v1347 = vpop.f32.mrf.mxu0
    %v1348 = vpop.f32.mrf.mxu0
    %1349 = vdwg.mxu0
    %v1350 = vlaneseq
    %v1351 = vshrl.u32 %v1350, 7
    %v1352 = vsub.s32 0, %v1351
    %v1353 = vrot.slane %v1345, %v1352
    %v1354 = vadd.f32 %v1241, %v1353
    %v1355 = vld [vmem:[%s31] sm:$0x1]
    %v1357 = vlaneseq
    %v1358 = vshrl.u32 %v1357, 7
    %v1359 = vsub.s32 0, %v1358
    %v1360 = vrot.slane %v1355, %v1359
    %v1362 = vadd.f32 %v1354, %v1360
    %v1363 = vmax.f32 %v1362, 0.0
    %v1364 = vmul.f32 %v1363, %v357
    %v1365 = vadd.f32 %v962, %v963
    %v1366 = vrot.slane %v1365, 4
    %v1367 = vadd.f32 %v1365, %v1366
    %v1368 = vrot.slane %v1367, 2
    %v1369 = vadd.f32 %v1367, %v1368
    %v1370 = vrot.slane %v1369, 1
    %v1371 = vadd.f32 %v1369, %v1370
    %v1372 = vmul.f32 %v1371, 0.0625
    %v1373 = vrot.slane %v1364, 4
    %v1374 = vadd.f32 %v1364, %v1373
    %v1375 = vrot.slane %v1374, 2
    %v1376 = vadd.f32 %v1374, %v1375
    %v1377 = vrot.slane %v1376, 1
    %v1378 = vadd.f32 %v1376, %v1377
    %v1379 = vmul.f32 %v1378, 0.125
    %v1380 = vpack.c.bf16 %v1372, %v1372
    %v1381 = vld [vmem:[#allocation10] sm:$0xf]
    %v1382 = vld [vmem:[#allocation10 + $0x4] sm:$0xf]
    %v1383 = vld [vmem:[#allocation10 + $0x8] sm:$0xf]
    %v1384 = vld [vmem:[#allocation10 + $0xc] sm:$0xf]
    %v1385 = vld [vmem:[#allocation10 + $0x10] sm:$0xf]
    %v1386 = vld [vmem:[#allocation10 + $0x14] sm:$0xf]
    %v1387 = vld [vmem:[#allocation10 + $0x18] sm:$0xf]
    %v1388 = vld [vmem:[#allocation10 + $0x1c] sm:$0xf]
    %v1389 = vld [vmem:[#allocation10 + $0x20] sm:$0xf]
    %v1390 = vld [vmem:[#allocation10 + $0x24] sm:$0xf]
    %v1391 = vld [vmem:[#allocation10 + $0x28] sm:$0xf]
    %v1392 = vld [vmem:[#allocation10 + $0x2c] sm:$0xf]
    %v1393 = vld [vmem:[#allocation10 + $0x30] sm:$0xf]
    %v1394 = vld [vmem:[#allocation10 + $0x34] sm:$0xf]
    %v1395 = vld [vmem:[#allocation10 + $0x38] sm:$0xf]
    %v1396 = vld [vmem:[#allocation10 + $0x3c] sm:$0xf]
    %v1397 = vpack.c.bf16 %v1379, %v1379
    %v1398 = vld [vmem:[#allocation11] sm:$0xf]
    %v1399 = vld [vmem:[#allocation11 + $0x4] sm:$0xf]
    %v1400 = vld [vmem:[#allocation11 + $0x8] sm:$0xf]
    %v1401 = vld [vmem:[#allocation11 + $0xc] sm:$0xf]
    %v1402 = vld [vmem:[#allocation11 + $0x10] sm:$0xf]
    %v1403 = vld [vmem:[#allocation11 + $0x14] sm:$0xf]
    %v1404 = vld [vmem:[#allocation11 + $0x18] sm:$0xf]
    %v1405 = vld [vmem:[#allocation11 + $0x1c] sm:$0xf]
    %v1406 = vld [vmem:[#allocation11 + $0x20] sm:$0xf]
    %v1407 = vld [vmem:[#allocation11 + $0x24] sm:$0xf]
    %v1408 = vld [vmem:[#allocation11 + $0x28] sm:$0xf]
    %v1409 = vld [vmem:[#allocation11 + $0x2c] sm:$0xf]
    %v1410 = vld [vmem:[#allocation11 + $0x30] sm:$0xf]
    %v1411 = vld [vmem:[#allocation11 + $0x34] sm:$0xf]
    %v1412 = vld [vmem:[#allocation11 + $0x38] sm:$0xf]
    %v1413 = vld [vmem:[#allocation11 + $0x3c] sm:$0xf]
    %v1430 = vunpack.c.l.b16 %v1398
    %v1431 = vunpack.c.l.b16 %v1399
    %v1432 = vunpack.c.l.b16 %v1400
    %v1433 = vunpack.c.l.b16 %v1401
    %v1434 = vunpack.c.l.b16 %v1402
    %v1435 = vunpack.c.l.b16 %v1403
    %v1436 = vunpack.c.l.b16 %v1404
    %v1437 = vunpack.c.l.b16 %v1405
    %v1438 = vunpack.c.l.b16 %v1406
    %v1439 = vunpack.c.l.b16 %v1407
    %v1440 = vunpack.c.l.b16 %v1408
    %v1441 = vunpack.c.l.b16 %v1409
    %v1442 = vunpack.c.l.b16 %v1410
    %v1443 = vunpack.c.l.b16 %v1411
    %v1444 = vunpack.c.l.b16 %v1412
    %v1445 = vunpack.c.l.b16 %v1413
    %v1446 = vpack.c.b16 %v1431, %v1430
    %v1447 = vpack.c.b16 %v1433, %v1432
    %v1448 = vpack.c.b16 %v1435, %v1434
    %v1449 = vpack.c.b16 %v1437, %v1436
    %v1450 = vpack.c.b16 %v1439, %v1438
    %v1451 = vpack.c.b16 %v1441, %v1440
    %v1452 = vpack.c.b16 %v1443, %v1442
    %v1453 = vpack.c.b16 %v1445, %v1444
    %1462 = vmatprep.subr.bf16.mxu0 0
    %1463 = vmatpush1.bf16.msra.mxu0 %v1453
    %1464 = vmatprep.subr.bf16.mxu0 0
    %1465 = vmatpush1.bf16.msra.mxu0 %v1452
    %1466 = vmatprep.subr.bf16.mxu0 0
    %1467 = vmatpush1.bf16.msra.mxu0 %v1451
    %1468 = vmatprep.subr.bf16.mxu0 0
    %1469 = vmatpush1.bf16.msra.mxu0 %v1450
    %1470 = vmatprep.subr.bf16.mxu0 0
    %1471 = vmatpush1.bf16.msra.mxu0 %v1449
    %1472 = vmatprep.subr.bf16.mxu0 0
    %1473 = vmatpush1.bf16.msra.mxu0 %v1448
    %1474 = vmatprep.subr.bf16.mxu0 0
    %1475 = vmatpush1.bf16.msra.mxu0 %v1447
    %1476 = vmatprep.subr.bf16.mxu0 0
    %1477 = vmatpush1.bf16.msra.mxu0 %v1446
    %1478 = vmatprep.subr.bf16.mxu0 0
    %1479 = vmatpush2.bf16.msra.mxu0 0
    %1480 = vmatprep.subr.bf16.mxu0 0
    %1481 = vmatpush2.bf16.msra.mxu0 0
    %1482 = vmatprep.subr.bf16.mxu0 0
    %1483 = vmatpush2.bf16.msra.mxu0 0
    %1484 = vmatprep.subr.bf16.mxu0 0
    %1485 = vmatpush2.bf16.msra.mxu0 0
    %1486 = vmatprep.subr.bf16.mxu0 0
    %1487 = vmatpush2.bf16.msra.mxu0 0
    %1488 = vmatprep.subr.bf16.mxu0 0
    %1489 = vmatpush2.bf16.msra.mxu0 0
    %1490 = vmatprep.subr.bf16.mxu0 0
    %1491 = vmatpush2.bf16.msra.mxu0 0
    %1492 = vmatprep.subr.bf16.mxu0 0
    %1493 = vmatpush2.bf16.msra.mxu0 0
    %1494 = vmatprep.mubr.bf16.mxu0 0
    %1495 = vmatmul.mubr.bf16.gmra.mxu0 %v1397
    %v1496 = vpop.f32.mrf.mxu0
    %v1497 = vadd.f32 0.0, %v1496
    %v1498 = vpop.f32.mrf.mxu0
    %v1499 = vpop.f32.mrf.mxu0
    %v1500 = vpop.f32.mrf.mxu0
    %1501 = vdwg.mxu0
    %v1518 = vunpack.c.l.b16 %v1381
    %v1519 = vunpack.c.l.b16 %v1382
    %v1520 = vunpack.c.l.b16 %v1383
    %v1521 = vunpack.c.l.b16 %v1384
    %v1522 = vunpack.c.l.b16 %v1385
    %v1523 = vunpack.c.l.b16 %v1386
    %v1524 = vunpack.c.l.b16 %v1387
    %v1525 = vunpack.c.l.b16 %v1388
    %v1526 = vunpack.c.l.b16 %v1389
    %v1527 = vunpack.c.l.b16 %v1390
    %v1528 = vunpack.c.l.b16 %v1391
    %v1529 = vunpack.c.l.b16 %v1392
    %v1530 = vunpack.c.l.b16 %v1393
    %v1531 = vunpack.c.l.b16 %v1394
    %v1532 = vunpack.c.l.b16 %v1395
    %v1533 = vunpack.c.l.b16 %v1396
    %v1534 = vpack.c.b16 %v1519, %v1518
    %v1535 = vpack.c.b16 %v1521, %v1520
    %v1536 = vpack.c.b16 %v1523, %v1522
    %v1537 = vpack.c.b16 %v1525, %v1524
    %v1538 = vpack.c.b16 %v1527, %v1526
    %v1539 = vpack.c.b16 %v1529, %v1528
    %v1540 = vpack.c.b16 %v1531, %v1530
    %v1541 = vpack.c.b16 %v1533, %v1532
    %1550 = vmatprep.subr.bf16.mxu0 0
    %1551 = vmatpush1.bf16.msra.mxu0 %v1541
    %1552 = vmatprep.subr.bf16.mxu0 0
    %1553 = vmatpush1.bf16.msra.mxu0 %v1540
    %1554 = vmatprep.subr.bf16.mxu0 0
    %1555 = vmatpush1.bf16.msra.mxu0 %v1539
    %1556 = vmatprep.subr.bf16.mxu0 0
    %1557 = vmatpush1.bf16.msra.mxu0 %v1538
    %1558 = vmatprep.subr.bf16.mxu0 0
    %1559 = vmatpush1.bf16.msra.mxu0 %v1537
    %1560 = vmatprep.subr.bf16.mxu0 0
    %1561 = vmatpush1.bf16.msra.mxu0 %v1536
    %1562 = vmatprep.subr.bf16.mxu0 0
    %1563 = vmatpush1.bf16.msra.mxu0 %v1535
    %1564 = vmatprep.subr.bf16.mxu0 0
    %1565 = vmatpush1.bf16.msra.mxu0 %v1534
    %1566 = vmatprep.subr.bf16.mxu0 0
    %1567 = vmatpush2.bf16.msra.mxu0 0
    %1568 = vmatprep.subr.bf16.mxu0 0
    %1569 = vmatpush2.bf16.msra.mxu0 0
    %1570 = vmatprep.subr.bf16.mxu0 0
    %1571 = vmatpush2.bf16.msra.mxu0 0
    %1572 = vmatprep.subr.bf16.mxu0 0
    %1573 = vmatpush2.bf16.msra.mxu0 0
    %1574 = vmatprep.subr.bf16.mxu0 0
    %1575 = vmatpush2.bf16.msra.mxu0 0
    %1576 = vmatprep.subr.bf16.mxu0 0
    %1577 = vmatpush2.bf16.msra.mxu0 0
    %1578 = vmatprep.subr.bf16.mxu0 0
    %1579 = vmatpush2.bf16.msra.mxu0 0
    %1580 = vmatprep.subr.bf16.mxu0 0
    %1581 = vmatpush2.bf16.msra.mxu0 0
    %1582 = vmatprep.mubr.bf16.mxu0 0
    %1583 = vmatmul.mubr.bf16.gmra.mxu0 %v1380
    %v1584 = vpop.f32.mrf.mxu0
    %v1585 = vadd.f32 %v1497, %v1584
    %v1586 = vpop.f32.mrf.mxu0
    %v1587 = vpop.f32.mrf.mxu0
    %v1588 = vpop.f32.mrf.mxu0
    %1589 = vdwg.mxu0
    %v1590 = vld [vmem:[#allocation13] sm:$0xf]
    %v1591 = vld [vmem:[#allocation13 + $0x4] sm:$0xf]
    %v1592 = vld [vmem:[#allocation13 + $0x8] sm:$0xf]
    %v1593 = vld [vmem:[#allocation13 + $0xc] sm:$0xf]
    %v1594 = vld [vmem:[#allocation13 + $0x10] sm:$0xf]
    %v1595 = vld [vmem:[#allocation13 + $0x14] sm:$0xf]
    %v1596 = vld [vmem:[#allocation13 + $0x18] sm:$0xf]
    %v1597 = vld [vmem:[#allocation13 + $0x1c] sm:$0xf]
    %v1598 = vld [vmem:[#allocation13 + $0x20] sm:$0xf]
    %v1599 = vld [vmem:[#allocation13 + $0x24] sm:$0xf]
    %v1600 = vld [vmem:[#allocation13 + $0x28] sm:$0xf]
    %v1601 = vld [vmem:[#allocation13 + $0x2c] sm:$0xf]
    %v1602 = vld [vmem:[#allocation13 + $0x30] sm:$0xf]
    %v1603 = vld [vmem:[#allocation13 + $0x34] sm:$0xf]
    %v1604 = vld [vmem:[#allocation13 + $0x38] sm:$0xf]
    %v1605 = vld [vmem:[#allocation13 + $0x3c] sm:$0xf]
    %v1622 = vunpack.c.l.b16 %v1590
    %v1623 = vunpack.c.l.b16 %v1591
    %v1624 = vunpack.c.l.b16 %v1592
    %v1625 = vunpack.c.l.b16 %v1593
    %v1626 = vunpack.c.l.b16 %v1594
    %v1627 = vunpack.c.l.b16 %v1595
    %v1628 = vunpack.c.l.b16 %v1596
    %v1629 = vunpack.c.l.b16 %v1597
    %v1630 = vunpack.c.l.b16 %v1598
    %v1631 = vunpack.c.l.b16 %v1599
    %v1632 = vunpack.c.l.b16 %v1600
    %v1633 = vunpack.c.l.b16 %v1601
    %v1634 = vunpack.c.l.b16 %v1602
    %v1635 = vunpack.c.l.b16 %v1603
    %v1636 = vunpack.c.l.b16 %v1604
    %v1637 = vunpack.c.l.b16 %v1605
    %v1638 = vpack.c.b16 %v1623, %v1622
    %v1639 = vpack.c.b16 %v1625, %v1624
    %v1640 = vpack.c.b16 %v1627, %v1626
    %v1641 = vpack.c.b16 %v1629, %v1628
    %v1642 = vpack.c.b16 %v1631, %v1630
    %v1643 = vpack.c.b16 %v1633, %v1632
    %v1644 = vpack.c.b16 %v1635, %v1634
    %v1645 = vpack.c.b16 %v1637, %v1636
    %1654 = vmatprep.subr.bf16.mxu0 0
    %1655 = vmatpush1.bf16.msra.mxu0 %v1645
    %1656 = vmatprep.subr.bf16.mxu0 0
    %1657 = vmatpush1.bf16.msra.mxu0 %v1644
    %1658 = vmatprep.subr.bf16.mxu0 0
    %1659 = vmatpush1.bf16.msra.mxu0 %v1643
    %1660 = vmatprep.subr.bf16.mxu0 0
    %1661 = vmatpush1.bf16.msra.mxu0 %v1642
    %1662 = vmatprep.subr.bf16.mxu0 0
    %1663 = vmatpush1.bf16.msra.mxu0 %v1641
    %1664 = vmatprep.subr.bf16.mxu0 0
    %1665 = vmatpush1.bf16.msra.mxu0 %v1640
    %1666 = vmatprep.subr.bf16.mxu0 0
    %1667 = vmatpush1.bf16.msra.mxu0 %v1639
    %1668 = vmatprep.subr.bf16.mxu0 0
    %1669 = vmatpush1.bf16.msra.mxu0 %v1638
    %1670 = vmatprep.subr.bf16.mxu0 0
    %1671 = vmatpush2.bf16.msra.mxu0 0
    %1672 = vmatprep.subr.bf16.mxu0 0
    %1673 = vmatpush2.bf16.msra.mxu0 0
    %1674 = vmatprep.subr.bf16.mxu0 0
    %1675 = vmatpush2.bf16.msra.mxu0 0
    %1676 = vmatprep.subr.bf16.mxu0 0
    %1677 = vmatpush2.bf16.msra.mxu0 0
    %1678 = vmatprep.subr.bf16.mxu0 0
    %1679 = vmatpush2.bf16.msra.mxu0 0
    %1680 = vmatprep.subr.bf16.mxu0 0
    %1681 = vmatpush2.bf16.msra.mxu0 0
    %1682 = vmatprep.subr.bf16.mxu0 0
    %1683 = vmatpush2.bf16.msra.mxu0 0
    %1684 = vmatprep.subr.bf16.mxu0 0
    %1685 = vmatpush2.bf16.msra.mxu0 0
    %1686 = vmatprep.mubr.bf16.mxu0 0
    %1687 = vmatmul.mubr.bf16.gmra.mxu0 %v290
    %v1688 = vpop.f32.mrf.mxu0
    %v1689 = vadd.f32 0.0, %v1688
    %v1690 = vpop.f32.mrf.mxu0
    %v1691 = vpop.f32.mrf.mxu0
    %v1692 = vpop.f32.mrf.mxu0
    %1693 = vdwg.mxu0
    %v1694 = vadd.f32 %v1585, %v1689
    %v1695 = vld [vmem:[%s39] sm:$0x1]
    %v1696 = vadd.f32 %v1694, %v1695
    %v1697 = vmax.f32 %v1696, 0.0
    %v1698 = vrcp.pop %v343
    %v1699 = vmul.f32 %v1034, %v1698
    %v1701 = vsel %vm339, %v338, 0
    %1703 = vmatprep.subr.mxu0 0.0
    %1704 = vmatpush1.msra.mxu0 0.0
    %1705 = vmatprep.subr.mxu0 0.0
    %1706 = vmatpush1.msra.mxu0 0.0
    %1707 = vmatprep.subr.mxu0 0.0
    %1708 = vmatpush1.msra.mxu0 0.0
    %1709 = vmatprep.subr.mxu0 0.0
    %1710 = vmatpush1.msra.mxu0 0.0
    %1711 = vmatprep.subr.mxu0 0.0
    %1712 = vmatpush1.msra.mxu0 0.0
    %1713 = vmatprep.subr.mxu0 0.0
    %1714 = vmatpush1.msra.mxu0 0.0
    %1715 = vmatprep.subr.mxu0 0.0
    %1716 = vmatpush1.msra.mxu0 0.0
    %1717 = vmatprep.subr.mxu0 0.0
    %1718 = vmatpush1.msra.mxu0 0.0
    %1719 = vmatprep.subr.mxu0 0.0
    %1720 = vmatpush1.msra.mxu0 0.0
    %1721 = vmatprep.subr.mxu0 0.0
    %1722 = vmatpush1.msra.mxu0 0.0
    %1723 = vmatprep.subr.mxu0 0.0
    %1724 = vmatpush1.msra.mxu0 0.0
    %1725 = vmatprep.subr.mxu0 0.0
    %1726 = vmatpush1.msra.mxu0 0.0
    %1727 = vmatprep.subr.mxu0 0.0
    %1728 = vmatpush1.msra.mxu0 0.0
    %1729 = vmatprep.subr.mxu0 0.0
    %1730 = vmatpush1.msra.mxu0 0.0
    %1731 = vmatprep.subr.mxu0 0.0
    %1732 = vmatpush1.msra.mxu0 %v963
    %1733 = vmatprep.subr.mxu0 0.0
    %1734 = vmatpush1.msra.mxu0 %v962
    %1735 = vmatprep.subr.mxu0 0.0
    %1736 = vmatpush2.msra.mxu0 0.0
    %1737 = vmatprep.subr.mxu0 0.0
    %1738 = vmatpush2.msra.mxu0 0.0
    %1739 = vmatprep.subr.mxu0 0.0
    %1740 = vmatpush2.msra.mxu0 0.0
    %1741 = vmatprep.subr.mxu0 0.0
    %1742 = vmatpush2.msra.mxu0 0.0
    %1743 = vmatprep.subr.mxu0 0.0
    %1744 = vmatpush2.msra.mxu0 0.0
    %1745 = vmatprep.subr.mxu0 0.0
    %1746 = vmatpush2.msra.mxu0 0.0
    %1747 = vmatprep.subr.mxu0 0.0
    %1748 = vmatpush2.msra.mxu0 0.0
    %1749 = vmatprep.subr.mxu0 0.0
    %1750 = vmatpush2.msra.mxu0 0.0
    %1751 = vmatprep.subr.mxu0 0.0
    %1752 = vmatpush2.msra.mxu0 0.0
    %1753 = vmatprep.subr.mxu0 0.0
    %1754 = vmatpush2.msra.mxu0 0.0
    %1755 = vmatprep.subr.mxu0 0.0
    %1756 = vmatpush2.msra.mxu0 0.0
    %1757 = vmatprep.subr.mxu0 0.0
    %1758 = vmatpush2.msra.mxu0 0.0
    %1759 = vmatprep.subr.mxu0 0.0
    %1760 = vmatpush2.msra.mxu0 0.0
    %1761 = vmatprep.subr.mxu0 0.0
    %1762 = vmatpush2.msra.mxu0 0.0
    %1763 = vmatprep.subr.mxu0 0.0
    %1764 = vmatpush2.msra.mxu0 0.0
    %1765 = vmatprep.subr.mxu0 0.0
    %1766 = vmatpush2.msra.mxu0 0.0
    %1767 = vmatprep.mubr.f32.mxu0 0.0
    %1768 = vmatmul.mubr.f32.gmra.mxu0 %v1701
    %v1769 = vpop.f32.mrf.mxu0
    %v1770 = vadd.f32 0.0, %v1769
    %v1771 = vpop.f32.mrf.mxu0
    %1772 = vdwg.mxu0
    %v1773 = vrcp.pop %v347
    %v1774 = vmul.f32 %v1770, %v1773
    %v1775 = vpack.c.bf16 %v1699, %v1699
    %v1776 = vld [vmem:[#allocation14] sm:$0xf]
    %v1777 = vld [vmem:[#allocation14 + $0x4] sm:$0xf]
    %v1778 = vld [vmem:[#allocation14 + $0x8] sm:$0xf]
    %v1779 = vld [vmem:[#allocation14 + $0xc] sm:$0xf]
    %v1780 = vld [vmem:[#allocation14 + $0x10] sm:$0xf]
    %v1781 = vld [vmem:[#allocation14 + $0x14] sm:$0xf]
    %v1782 = vld [vmem:[#allocation14 + $0x18] sm:$0xf]
    %v1783 = vld [vmem:[#allocation14 + $0x1c] sm:$0xf]
    %v1784 = vld [vmem:[#allocation14 + $0x20] sm:$0xf]
    %v1785 = vld [vmem:[#allocation14 + $0x24] sm:$0xf]
    %v1786 = vld [vmem:[#allocation14 + $0x28] sm:$0xf]
    %v1787 = vld [vmem:[#allocation14 + $0x2c] sm:$0xf]
    %v1788 = vld [vmem:[#allocation14 + $0x30] sm:$0xf]
    %v1789 = vld [vmem:[#allocation14 + $0x34] sm:$0xf]
    %v1790 = vld [vmem:[#allocation14 + $0x38] sm:$0xf]
    %v1791 = vld [vmem:[#allocation14 + $0x3c] sm:$0xf]
    %v1792 = vpack.c.bf16 %v1774, %v1774
    %v1793 = vld [vmem:[#allocation16] sm:$0xf]
    %v1794 = vld [vmem:[#allocation16 + $0x4] sm:$0xf]
    %v1795 = vld [vmem:[#allocation16 + $0x8] sm:$0xf]
    %v1796 = vld [vmem:[#allocation16 + $0xc] sm:$0xf]
    %v1797 = vld [vmem:[#allocation16 + $0x10] sm:$0xf]
    %v1798 = vld [vmem:[#allocation16 + $0x14] sm:$0xf]
    %v1799 = vld [vmem:[#allocation16 + $0x18] sm:$0xf]
    %v1800 = vld [vmem:[#allocation16 + $0x1c] sm:$0xf]
    %v1801 = vld [vmem:[#allocation16 + $0x20] sm:$0xf]
    %v1802 = vld [vmem:[#allocation16 + $0x24] sm:$0xf]
    %v1803 = vld [vmem:[#allocation16 + $0x28] sm:$0xf]
    %v1804 = vld [vmem:[#allocation16 + $0x2c] sm:$0xf]
    %v1805 = vld [vmem:[#allocation16 + $0x30] sm:$0xf]
    %v1806 = vld [vmem:[#allocation16 + $0x34] sm:$0xf]
    %v1807 = vld [vmem:[#allocation16 + $0x38] sm:$0xf]
    %v1808 = vld [vmem:[#allocation16 + $0x3c] sm:$0xf]
    %v1825 = vunpack.c.l.b16 %v1793
    %v1826 = vunpack.c.l.b16 %v1794
    %v1827 = vunpack.c.l.b16 %v1795
    %v1828 = vunpack.c.l.b16 %v1796
    %v1829 = vunpack.c.l.b16 %v1797
    %v1830 = vunpack.c.l.b16 %v1798
    %v1831 = vunpack.c.l.b16 %v1799
    %v1832 = vunpack.c.l.b16 %v1800
    %v1833 = vunpack.c.l.b16 %v1801
    %v1834 = vunpack.c.l.b16 %v1802
    %v1835 = vunpack.c.l.b16 %v1803
    %v1836 = vunpack.c.l.b16 %v1804
    %v1837 = vunpack.c.l.b16 %v1805
    %v1838 = vunpack.c.l.b16 %v1806
    %v1839 = vunpack.c.l.b16 %v1807
    %v1840 = vunpack.c.l.b16 %v1808
    %v1841 = vpack.c.b16 %v1826, %v1825
    %v1842 = vpack.c.b16 %v1828, %v1827
    %v1843 = vpack.c.b16 %v1830, %v1829
    %v1844 = vpack.c.b16 %v1832, %v1831
    %v1845 = vpack.c.b16 %v1834, %v1833
    %v1846 = vpack.c.b16 %v1836, %v1835
    %v1847 = vpack.c.b16 %v1838, %v1837
    %v1848 = vpack.c.b16 %v1840, %v1839
    %1857 = vmatprep.subr.bf16.mxu0 0
    %1858 = vmatpush1.bf16.msra.mxu0 %v1848
    %1859 = vmatprep.subr.bf16.mxu0 0
    %1860 = vmatpush1.bf16.msra.mxu0 %v1847
    %1861 = vmatprep.subr.bf16.mxu0 0
    %1862 = vmatpush1.bf16.msra.mxu0 %v1846
    %1863 = vmatprep.subr.bf16.mxu0 0
    %1864 = vmatpush1.bf16.msra.mxu0 %v1845
    %1865 = vmatprep.subr.bf16.mxu0 0
    %1866 = vmatpush1.bf16.msra.mxu0 %v1844
    %1867 = vmatprep.subr.bf16.mxu0 0
    %1868 = vmatpush1.bf16.msra.mxu0 %v1843
    %1869 = vmatprep.subr.bf16.mxu0 0
    %1870 = vmatpush1.bf16.msra.mxu0 %v1842
    %1871 = vmatprep.subr.bf16.mxu0 0
    %1872 = vmatpush1.bf16.msra.mxu0 %v1841
    %1873 = vmatprep.subr.bf16.mxu0 0
    %1874 = vmatpush2.bf16.msra.mxu0 0
    %1875 = vmatprep.subr.bf16.mxu0 0
    %1876 = vmatpush2.bf16.msra.mxu0 0
    %1877 = vmatprep.subr.bf16.mxu0 0
    %1878 = vmatpush2.bf16.msra.mxu0 0
    %1879 = vmatprep.subr.bf16.mxu0 0
    %1880 = vmatpush2.bf16.msra.mxu0 0
    %1881 = vmatprep.subr.bf16.mxu0 0
    %1882 = vmatpush2.bf16.msra.mxu0 0
    %1883 = vmatprep.subr.bf16.mxu0 0
    %1884 = vmatpush2.bf16.msra.mxu0 0
    %1885 = vmatprep.subr.bf16.mxu0 0
    %1886 = vmatpush2.bf16.msra.mxu0 0
    %1887 = vmatprep.subr.bf16.mxu0 0
    %1888 = vmatpush2.bf16.msra.mxu0 0
    %1889 = vmatprep.mubr.bf16.mxu0 0
    %1890 = vmatmul.mubr.bf16.gmra.mxu0 %v1792
    %v1891 = vpop.f32.mrf.mxu0
    %v1892 = vadd.f32 0.0, %v1891
    %v1893 = vpop.f32.mrf.mxu0
    %v1894 = vpop.f32.mrf.mxu0
    %v1895 = vpop.f32.mrf.mxu0
    %1896 = vdwg.mxu0
    %v1913 = vunpack.c.l.b16 %v1776
    %v1914 = vunpack.c.l.b16 %v1777
    %v1915 = vunpack.c.l.b16 %v1778
    %v1916 = vunpack.c.l.b16 %v1779
    %v1917 = vunpack.c.l.b16 %v1780
    %v1918 = vunpack.c.l.b16 %v1781
    %v1919 = vunpack.c.l.b16 %v1782
    %v1920 = vunpack.c.l.b16 %v1783
    %v1921 = vunpack.c.l.b16 %v1784
    %v1922 = vunpack.c.l.b16 %v1785
    %v1923 = vunpack.c.l.b16 %v1786
    %v1924 = vunpack.c.l.b16 %v1787
    %v1925 = vunpack.c.l.b16 %v1788
    %v1926 = vunpack.c.l.b16 %v1789
    %v1927 = vunpack.c.l.b16 %v1790
    %v1928 = vunpack.c.l.b16 %v1791
    %v1929 = vpack.c.b16 %v1914, %v1913
    %v1930 = vpack.c.b16 %v1916, %v1915
    %v1931 = vpack.c.b16 %v1918, %v1917
    %v1932 = vpack.c.b16 %v1920, %v1919
    %v1933 = vpack.c.b16 %v1922, %v1921
    %v1934 = vpack.c.b16 %v1924, %v1923
    %v1935 = vpack.c.b16 %v1926, %v1925
    %v1936 = vpack.c.b16 %v1928, %v1927
    %1945 = vmatprep.subr.bf16.mxu0 0
    %1946 = vmatpush1.bf16.msra.mxu0 %v1936
    %1947 = vmatprep.subr.bf16.mxu0 0
    %1948 = vmatpush1.bf16.msra.mxu0 %v1935
    %1949 = vmatprep.subr.bf16.mxu0 0
    %1950 = vmatpush1.bf16.msra.mxu0 %v1934
    %1951 = vmatprep.subr.bf16.mxu0 0
    %1952 = vmatpush1.bf16.msra.mxu0 %v1933
    %1953 = vmatprep.subr.bf16.mxu0 0
    %1954 = vmatpush1.bf16.msra.mxu0 %v1932
    %1955 = vmatprep.subr.bf16.mxu0 0
    %1956 = vmatpush1.bf16.msra.mxu0 %v1931
    %1957 = vmatprep.subr.bf16.mxu0 0
    %1958 = vmatpush1.bf16.msra.mxu0 %v1930
    %1959 = vmatprep.subr.bf16.mxu0 0
    %1960 = vmatpush1.bf16.msra.mxu0 %v1929
    %1961 = vmatprep.subr.bf16.mxu0 0
    %1962 = vmatpush2.bf16.msra.mxu0 0
    %1963 = vmatprep.subr.bf16.mxu0 0
    %1964 = vmatpush2.bf16.msra.mxu0 0
    %1965 = vmatprep.subr.bf16.mxu0 0
    %1966 = vmatpush2.bf16.msra.mxu0 0
    %1967 = vmatprep.subr.bf16.mxu0 0
    %1968 = vmatpush2.bf16.msra.mxu0 0
    %1969 = vmatprep.subr.bf16.mxu0 0
    %1970 = vmatpush2.bf16.msra.mxu0 0
    %1971 = vmatprep.subr.bf16.mxu0 0
    %1972 = vmatpush2.bf16.msra.mxu0 0
    %1973 = vmatprep.subr.bf16.mxu0 0
    %1974 = vmatpush2.bf16.msra.mxu0 0
    %1975 = vmatprep.subr.bf16.mxu0 0
    %1976 = vmatpush2.bf16.msra.mxu0 0
    %1977 = vmatprep.mubr.bf16.mxu0 0
    %1978 = vmatmul.mubr.bf16.gmra.mxu0 %v1775
    %v1979 = vpop.f32.mrf.mxu0
    %v1980 = vadd.f32 %v1892, %v1979
    %v1981 = vpop.f32.mrf.mxu0
    %v1982 = vpop.f32.mrf.mxu0
    %v1983 = vpop.f32.mrf.mxu0
    %1984 = vdwg.mxu0
    %v1985 = vpack.c.bf16 %v1364, %v1364
    %v1986 = vld [vmem:[#allocation17] sm:$0xf]
    %v1987 = vld [vmem:[#allocation17 + $0x4] sm:$0xf]
    %v1988 = vld [vmem:[#allocation17 + $0x8] sm:$0xf]
    %v1989 = vld [vmem:[#allocation17 + $0xc] sm:$0xf]
    %v1990 = vld [vmem:[#allocation17 + $0x10] sm:$0xf]
    %v1991 = vld [vmem:[#allocation17 + $0x14] sm:$0xf]
    %v1992 = vld [vmem:[#allocation17 + $0x18] sm:$0xf]
    %v1993 = vld [vmem:[#allocation17 + $0x1c] sm:$0xf]
    %v1994 = vld [vmem:[#allocation17 + $0x20] sm:$0xf]
    %v1995 = vld [vmem:[#allocation17 + $0x24] sm:$0xf]
    %v1996 = vld [vmem:[#allocation17 + $0x28] sm:$0xf]
    %v1997 = vld [vmem:[#allocation17 + $0x2c] sm:$0xf]
    %v1998 = vld [vmem:[#allocation17 + $0x30] sm:$0xf]
    %v1999 = vld [vmem:[#allocation17 + $0x34] sm:$0xf]
    %v2000 = vld [vmem:[#allocation17 + $0x38] sm:$0xf]
    %v2001 = vld [vmem:[#allocation17 + $0x3c] sm:$0xf]
    %v2018 = vunpack.c.l.b16 %v1986
    %v2019 = vunpack.c.l.b16 %v1987
    %v2020 = vunpack.c.l.b16 %v1988
    %v2021 = vunpack.c.l.b16 %v1989
    %v2022 = vunpack.c.l.b16 %v1990
    %v2023 = vunpack.c.l.b16 %v1991
    %v2024 = vunpack.c.l.b16 %v1992
    %v2025 = vunpack.c.l.b16 %v1993
    %v2026 = vunpack.c.l.b16 %v1994
    %v2027 = vunpack.c.l.b16 %v1995
    %v2028 = vunpack.c.l.b16 %v1996
    %v2029 = vunpack.c.l.b16 %v1997
    %v2030 = vunpack.c.l.b16 %v1998
    %v2031 = vunpack.c.l.b16 %v1999
    %v2032 = vunpack.c.l.b16 %v2000
    %v2033 = vunpack.c.l.b16 %v2001
    %v2034 = vpack.c.b16 %v2019, %v2018
    %v2035 = vpack.c.b16 %v2021, %v2020
    %v2036 = vpack.c.b16 %v2023, %v2022
    %v2037 = vpack.c.b16 %v2025, %v2024
    %v2038 = vpack.c.b16 %v2027, %v2026
    %v2039 = vpack.c.b16 %v2029, %v2028
    %v2040 = vpack.c.b16 %v2031, %v2030
    %v2041 = vpack.c.b16 %v2033, %v2032
    %2050 = vmatprep.subr.bf16.mxu0 0
    %2051 = vmatpush1.bf16.msra.mxu0 %v2041
    %2052 = vmatprep.subr.bf16.mxu0 0
    %2053 = vmatpush1.bf16.msra.mxu0 %v2040
    %2054 = vmatprep.subr.bf16.mxu0 0
    %2055 = vmatpush1.bf16.msra.mxu0 %v2039
    %2056 = vmatprep.subr.bf16.mxu0 0
    %2057 = vmatpush1.bf16.msra.mxu0 %v2038
    %2058 = vmatprep.subr.bf16.mxu0 0
    %2059 = vmatpush1.bf16.msra.mxu0 %v2037
    %2060 = vmatprep.subr.bf16.mxu0 0
    %2061 = vmatpush1.bf16.msra.mxu0 %v2036
    %2062 = vmatprep.subr.bf16.mxu0 0
    %2063 = vmatpush1.bf16.msra.mxu0 %v2035
    %2064 = vmatprep.subr.bf16.mxu0 0
    %2065 = vmatpush1.bf16.msra.mxu0 %v2034
    %2066 = vmatprep.subr.bf16.mxu0 0
    %2067 = vmatpush2.bf16.msra.mxu0 0
    %2068 = vmatprep.subr.bf16.mxu0 0
    %2069 = vmatpush2.bf16.msra.mxu0 0
    %2070 = vmatprep.subr.bf16.mxu0 0
    %2071 = vmatpush2.bf16.msra.mxu0 0
    %2072 = vmatprep.subr.bf16.mxu0 0
    %2073 = vmatpush2.bf16.msra.mxu0 0
    %2074 = vmatprep.subr.bf16.mxu0 0
    %2075 = vmatpush2.bf16.msra.mxu0 0
    %2076 = vmatprep.subr.bf16.mxu0 0
    %2077 = vmatpush2.bf16.msra.mxu0 0
    %2078 = vmatprep.subr.bf16.mxu0 0
    %2079 = vmatpush2.bf16.msra.mxu0 0
    %2080 = vmatprep.subr.bf16.mxu0 0
    %2081 = vmatpush2.bf16.msra.mxu0 0
    %2082 = vmatprep.mubr.bf16.mxu0 0
    %2083 = vmatmul.mubr.bf16.gmra.mxu0 %v1985
    %v2084 = vpop.f32.mrf.mxu0
    %v2085 = vadd.f32 0.0, %v2084
    %v2086 = vpop.f32.mrf.mxu0
    %v2087 = vpop.f32.mrf.mxu0
    %v2088 = vpop.f32.mrf.mxu0
    %2089 = vdwg.mxu0
    %v2090 = vadd.f32 %v1980, %v2085
    %v2091 = vpack.c.bf16 %v1697, %v1697
    %v2092 = vld [vmem:[#allocation19] sm:$0xf]
    %v2093 = vld [vmem:[#allocation19 + $0x4] sm:$0xf]
    %v2094 = vld [vmem:[#allocation19 + $0x8] sm:$0xf]
    %v2095 = vld [vmem:[#allocation19 + $0xc] sm:$0xf]
    %v2096 = vld [vmem:[#allocation19 + $0x10] sm:$0xf]
    %v2097 = vld [vmem:[#allocation19 + $0x14] sm:$0xf]
    %v2098 = vld [vmem:[#allocation19 + $0x18] sm:$0xf]
    %v2099 = vld [vmem:[#allocation19 + $0x1c] sm:$0xf]
    %v2100 = vld [vmem:[#allocation19 + $0x20] sm:$0xf]
    %v2101 = vld [vmem:[#allocation19 + $0x24] sm:$0xf]
    %v2102 = vld [vmem:[#allocation19 + $0x28] sm:$0xf]
    %v2103 = vld [vmem:[#allocation19 + $0x2c] sm:$0xf]
    %v2104 = vld [vmem:[#allocation19 + $0x30] sm:$0xf]
    %v2105 = vld [vmem:[#allocation19 + $0x34] sm:$0xf]
    %v2106 = vld [vmem:[#allocation19 + $0x38] sm:$0xf]
    %v2107 = vld [vmem:[#allocation19 + $0x3c] sm:$0xf]
    %v2124 = vunpack.c.l.b16 %v2092
    %v2125 = vunpack.c.l.b16 %v2093
    %v2126 = vunpack.c.l.b16 %v2094
    %v2127 = vunpack.c.l.b16 %v2095
    %v2128 = vunpack.c.l.b16 %v2096
    %v2129 = vunpack.c.l.b16 %v2097
    %v2130 = vunpack.c.l.b16 %v2098
    %v2131 = vunpack.c.l.b16 %v2099
    %v2132 = vunpack.c.l.b16 %v2100
    %v2133 = vunpack.c.l.b16 %v2101
    %v2134 = vunpack.c.l.b16 %v2102
    %v2135 = vunpack.c.l.b16 %v2103
    %v2136 = vunpack.c.l.b16 %v2104
    %v2137 = vunpack.c.l.b16 %v2105
    %v2138 = vunpack.c.l.b16 %v2106
    %v2139 = vunpack.c.l.b16 %v2107
    %v2140 = vpack.c.b16 %v2125, %v2124
    %v2141 = vpack.c.b16 %v2127, %v2126
    %v2142 = vpack.c.b16 %v2129, %v2128
    %v2143 = vpack.c.b16 %v2131, %v2130
    %v2144 = vpack.c.b16 %v2133, %v2132
    %v2145 = vpack.c.b16 %v2135, %v2134
    %v2146 = vpack.c.b16 %v2137, %v2136
    %v2147 = vpack.c.b16 %v2139, %v2138
    %2156 = vmatprep.subr.bf16.mxu0 0
    %2157 = vmatpush1.bf16.msra.mxu0 %v2147
    %2158 = vmatprep.subr.bf16.mxu0 0
    %2159 = vmatpush1.bf16.msra.mxu0 %v2146
    %2160 = vmatprep.subr.bf16.mxu0 0
    %2161 = vmatpush1.bf16.msra.mxu0 %v2145
    %2162 = vmatprep.subr.bf16.mxu0 0
    %2163 = vmatpush1.bf16.msra.mxu0 %v2144
    %2164 = vmatprep.subr.bf16.mxu0 0
    %2165 = vmatpush1.bf16.msra.mxu0 %v2143
    %2166 = vmatprep.subr.bf16.mxu0 0
    %2167 = vmatpush1.bf16.msra.mxu0 %v2142
    %2168 = vmatprep.subr.bf16.mxu0 0
    %2169 = vmatpush1.bf16.msra.mxu0 %v2141
    %2170 = vmatprep.subr.bf16.mxu0 0
    %2171 = vmatpush1.bf16.msra.mxu0 %v2140
    %2172 = vmatprep.subr.bf16.mxu0 0
    %2173 = vmatpush2.bf16.msra.mxu0 0
    %2174 = vmatprep.subr.bf16.mxu0 0
    %2175 = vmatpush2.bf16.msra.mxu0 0
    %2176 = vmatprep.subr.bf16.mxu0 0
    %2177 = vmatpush2.bf16.msra.mxu0 0
    %2178 = vmatprep.subr.bf16.mxu0 0
    %2179 = vmatpush2.bf16.msra.mxu0 0
    %2180 = vmatprep.subr.bf16.mxu0 0
    %2181 = vmatpush2.bf16.msra.mxu0 0
    %2182 = vmatprep.subr.bf16.mxu0 0
    %2183 = vmatpush2.bf16.msra.mxu0 0
    %2184 = vmatprep.subr.bf16.mxu0 0
    %2185 = vmatpush2.bf16.msra.mxu0 0
    %2186 = vmatprep.subr.bf16.mxu0 0
    %2187 = vmatpush2.bf16.msra.mxu0 0
    %2188 = vmatprep.mubr.bf16.mxu0 0
    %2189 = vmatmul.mubr.bf16.gmra.mxu0 %v2091
    %v2190 = vpop.f32.mrf.mxu0
    %v2191 = vadd.f32 0.0, %v2190
    %v2192 = vpop.f32.mrf.mxu0
    %v2193 = vpop.f32.mrf.mxu0
    %v2194 = vpop.f32.mrf.mxu0
    %2195 = vdwg.mxu0
    %v2196 = vlaneseq
    %v2197 = vshrl.u32 %v2196, 7
    %v2198 = vsub.s32 0, %v2197
    %v2199 = vrot.slane %v2191, %v2198
    %v2200 = vadd.f32 %v2090, %v2199
    %v2201 = vld [vmem:[%s49] sm:$0x1]
    %v2203 = vlaneseq
    %v2204 = vshrl.u32 %v2203, 7
    %v2205 = vsub.s32 0, %v2204
    %v2206 = vrot.slane %v2201, %v2205
    %v2208 = vadd.f32 %v2200, %v2206
    %v2209 = vmax.f32 %v2208, 0.0
    %v2210 = vpack.c.bf16 %v2209, %v2209
    %v2211 = vld [vmem:[#allocation20] sm:$0xf]
    %v2212 = vld [vmem:[#allocation20 + $0x4] sm:$0xf]
    %v2213 = vld [vmem:[#allocation20 + $0x8] sm:$0xf]
    %v2214 = vld [vmem:[#allocation20 + $0xc] sm:$0xf]
    %v2215 = vld [vmem:[#allocation20 + $0x10] sm:$0xf]
    %v2216 = vld [vmem:[#allocation20 + $0x14] sm:$0xf]
    %v2217 = vld [vmem:[#allocation20 + $0x18] sm:$0xf]
    %v2218 = vld [vmem:[#allocation20 + $0x1c] sm:$0xf]
    %v2219 = vld [vmem:[#allocation20 + $0x20] sm:$0xf]
    %v2220 = vld [vmem:[#allocation20 + $0x24] sm:$0xf]
    %v2221 = vld [vmem:[#allocation20 + $0x28] sm:$0xf]
    %v2222 = vld [vmem:[#allocation20 + $0x2c] sm:$0xf]
    %v2223 = vld [vmem:[#allocation20 + $0x30] sm:$0xf]
    %v2224 = vld [vmem:[#allocation20 + $0x34] sm:$0xf]
    %v2225 = vld [vmem:[#allocation20 + $0x38] sm:$0xf]
    %v2226 = vld [vmem:[#allocation20 + $0x3c] sm:$0xf]
    %v2227 = vld [vmem:[%s53] sm:$0x1]
    %v2229 = vlaneseq
    %v2230 = vshrl.u32 %v2229, 7
    %v2231 = vsub.s32 0, %v2230
    %v2232 = vrot.slane %v2227, %v2231
    %v2250 = vunpack.c.l.b16 %v2211
    %v2251 = vunpack.c.l.b16 %v2212
    %v2252 = vunpack.c.l.b16 %v2213
    %v2253 = vunpack.c.l.b16 %v2214
    %v2254 = vunpack.c.l.b16 %v2215
    %v2255 = vunpack.c.l.b16 %v2216
    %v2256 = vunpack.c.l.b16 %v2217
    %v2257 = vunpack.c.l.b16 %v2218
    %v2258 = vunpack.c.l.b16 %v2219
    %v2259 = vunpack.c.l.b16 %v2220
    %v2260 = vunpack.c.l.b16 %v2221
    %v2261 = vunpack.c.l.b16 %v2222
    %v2262 = vunpack.c.l.b16 %v2223
    %v2263 = vunpack.c.l.b16 %v2224
    %v2264 = vunpack.c.l.b16 %v2225
    %v2265 = vunpack.c.l.b16 %v2226
    %v2266 = vpack.c.b16 %v2251, %v2250
    %v2267 = vpack.c.b16 %v2253, %v2252
    %v2268 = vpack.c.b16 %v2255, %v2254
    %v2269 = vpack.c.b16 %v2257, %v2256
    %v2270 = vpack.c.b16 %v2259, %v2258
    %v2271 = vpack.c.b16 %v2261, %v2260
    %v2272 = vpack.c.b16 %v2263, %v2262
    %v2273 = vpack.c.b16 %v2265, %v2264
    %2282 = vmatprep.subr.bf16.mxu0 0
    %2283 = vmatpush1.bf16.msra.mxu0 %v2273
    %2284 = vmatprep.subr.bf16.mxu0 0
    %2285 = vmatpush1.bf16.msra.mxu0 %v2272
    %2286 = vmatprep.subr.bf16.mxu0 0
    %2287 = vmatpush1.bf16.msra.mxu0 %v2271
    %2288 = vmatprep.subr.bf16.mxu0 0
    %2289 = vmatpush1.bf16.msra.mxu0 %v2270
    %2290 = vmatprep.subr.bf16.mxu0 0
    %2291 = vmatpush1.bf16.msra.mxu0 %v2269
    %2292 = vmatprep.subr.bf16.mxu0 0
    %2293 = vmatpush1.bf16.msra.mxu0 %v2268
    %2294 = vmatprep.subr.bf16.mxu0 0
    %2295 = vmatpush1.bf16.msra.mxu0 %v2267
    %2296 = vmatprep.subr.bf16.mxu0 0
    %2297 = vmatpush1.bf16.msra.mxu0 %v2266
    %2298 = vmatprep.subr.bf16.mxu0 0
    %2299 = vmatpush2.bf16.msra.mxu0 0
    %2300 = vmatprep.subr.bf16.mxu0 0
    %2301 = vmatpush2.bf16.msra.mxu0 0
    %2302 = vmatprep.subr.bf16.mxu0 0
    %2303 = vmatpush2.bf16.msra.mxu0 0
    %2304 = vmatprep.subr.bf16.mxu0 0
    %2305 = vmatpush2.bf16.msra.mxu0 0
    %2306 = vmatprep.subr.bf16.mxu0 0
    %2307 = vmatpush2.bf16.msra.mxu0 0
    %2308 = vmatprep.subr.bf16.mxu0 0
    %2309 = vmatpush2.bf16.msra.mxu0 0
    %2310 = vmatprep.subr.bf16.mxu0 0
    %2311 = vmatpush2.bf16.msra.mxu0 0
    %2312 = vmatprep.subr.bf16.mxu0 0
    %2313 = vmatpush2.bf16.msra.mxu0 0
    %2314 = vmatprep.mubr.bf16.mxu0 0
    %2315 = vmatmul.mubr.bf16.gmra.mxu0 %v2210
    %v2316 = vpop.f32.mrf.mxu0
    %v2317 = vadd.f32 %v2232, %v2316
    %v2318 = vpop.f32.mrf.mxu0
    %v2319 = vpop.f32.mrf.mxu0
    %v2320 = vpop.f32.mrf.mxu0
    %2321 = vdwg.mxu0
    %2322 = vst [vmem:[%s55] sm:$0xff] %v2317
    %2323 = vst [vmem:[#allocation22] sm:$0xff] %v962
    %2324 = vst [vmem:[#allocation22 + $0x8] sm:$0xff] %v963
    %2325 = vst [vmem:[#allocation23] sm:$0x1] %v1697
    // Predicated region
    $region158: #{net2_forward.1} parent=1 // pred_check
      _
    $region159: #{net2_forward.1} parent=1 // pred_check_branch
      %2327 = sbr.rel (0) target = $region161
    $region160: #{net2_forward.1} parent=1 // pred_region
      _
    $region161: #{net2_forward.1} parent=1 // pred_fallthru
      _
    // Predicated region
    $region162: #{net2_forward.1} parent=1 // pred_check
      _
    $region163: #{net2_forward.1} parent=1 // pred_check_branch
      %2329 = sbr.rel (0) target = $region165
    $region164: #{net2_forward.1} parent=1 // pred_region
      %s2331 = ssub.s32 256, 256
      %2332 = vsyncadd [#allocation4], %s2331
      %s2333 = sshll.u32 [#allocation22], 4
      %s2334 = int_to_ptr.vmem [resolvable:$true] %s2333
      %2339 = dma.vmem_to_hbm [thread:$0]  %s2334, 256, %s57, [#allocation4], 128, 128, 8
    $region165: #{net2_forward.1} parent=1 // pred_fallthru
      _
    // Predicated region
    $region166: #{net2_forward.1} parent=1 // pred_check
      _
    $region167: #{net2_forward.1} parent=1 // pred_check_branch
      %2341 = sbr.rel (0) target = $region169
    $region168: #{net2_forward.1} parent=1 // pred_region
      %s2343 = ssub.s32 16, 16
      %2344 = vsyncadd [#allocation24], %s2343
      %s2346 = sshll.u32 [#allocation23], 4
      %s2347 = int_to_ptr.vmem [resolvable:$true] %s2346
      %2349 = dma.vmem_to_hbm [thread:$0]  %s2347, 16, %s59, [#allocation24]
    $region169: #{net2_forward.1} parent=1 // pred_fallthru
      _
    // Predicated region
    $region170: #{net2_forward.1} parent=1 // pred_check
      _
    $region171: #{net2_forward.1} parent=1 // pred_check_branch
      %2351 = sbr.rel (0) target = $region173
    $region172: #{net2_forward.1} parent=1 // pred_region
      _
    $region173: #{net2_forward.1} parent=1 // pred_fallthru
      _
    // Predicated region
    $region174: #{net2_forward.1} parent=1 // pred_check
      _
    $region175: #{net2_forward.1} parent=1 // pred_check_branch
      %2353 = sbr.rel (0) target = $region177
    $region176: #{net2_forward.1} parent=1 // pred_region
      %2354 = dma.done [#allocation4], 256
    $region177: #{net2_forward.1} parent=1 // pred_fallthru
      _
    // Predicated region
    $region178: #{net2_forward.1} parent=1 // pred_check
      _
    $region179: #{net2_forward.1} parent=1 // pred_check_branch
      %2356 = sbr.rel (0) target = $region181
    $region180: #{net2_forward.1} parent=1 // pred_region
      %2357 = dma.done [#allocation24], 16
    $region181: #{net2_forward.1} parent=1 // pred_fallthru
      _
    %2358 = vsyncpa [#allocation3], 1
    %2359 = vsyncpa [#allocation6], 1
    %2360 = vsyncpa [#allocation9], 1
    %2361 = vsyncpa [#allocation12], 1
    %2362 = vsyncpa [#allocation15], 1
    %2363 = vsyncpa [#allocation18], 1
    %2364 = vsyncpa [#allocation21], 1
    %2365 = vsyncpa [#allocation4], 1
    %2366 = vsyncpa [#allocation24], 1

</llo_original>
